<compile_context>
chip_gen: v7x
topology: tpu7x:2x2x1
jax: 0.10.0
libtpu: 0.0.40
codegen_flags: <defaults>
</compile_context>

<pallas_src>
import math
import numpy as np
import jax
import jax.numpy as jnp
from jax.experimental import pallas as pl
from jax.experimental.pallas import tpu as pltpu

# ----------------------------- config ---------------------------------------
BQ, BP = 4, 8           # num queries, num passages (BP = BQ * (1 + hn_num))
SEQ = 8                 # sequence length
D = 128                 # hidden size
V = 256                 # vocab size
HN_NUM = 1              # data_args.hn_num
MLM_WEIGHT = 0.1        # train_args.mlm_weight

NB = BQ + BP            # total batch rows through the shared encoder
NTOK = NB * SEQ         # total token rows
NQ_TOK = BQ * SEQ       # query token rows (first NQ_TOK rows)
NEG = -1e30             # column mask value for the contrastive CE

_VMEM = pltpu.MemorySpace.VMEM


def _vmem_specs(n):
    return [pl.BlockSpec(memory_space=_VMEM) for _ in range(n)]


def _gelu(x):
    # tanh-approximation GELU (matches the reference exactly)
    return 0.5 * x * (1.0 + jnp.tanh(jnp.sqrt(2.0 / jnp.pi)
                                     * (x + 0.044715 * x * x * x)))


# ----------------------------- fused kernel ----------------------------------
def fused_forward_kernel(ids_ref, tgt_ref, mlm_ref,
                         embed_ref, wlm_ref, blm_ref,
                         wp1_ref, bp1_ref, wp2_ref, bp2_ref,
                         wt_ref, bt_ref, g_ref, beta_ref, wd_ref, bd_ref,
                         gram_ref, losses_ref, reps_ref):
    f32, bf16 = jnp.float32, jnp.bfloat16

    # ---- embedding gather as one-hot @ table (stays on the MXU) -------------
    ids = ids_ref[...]                                          # (NTOK, 1) i32
    vcol = jax.lax.broadcasted_iota(jnp.int32, (NTOK, V), 1)
    onehot = jnp.where(vcol == ids, 1.0, 0.0).astype(bf16)      # (NTOK, V)
    emb = jnp.dot(onehot, embed_ref[...],
                  preferred_element_type=f32)                   # (NTOK, D) f32

    # ---- synthetic LM body: hidden = tanh(emb @ W_lm + b_lm) ----------------
    hidden = jnp.tanh(jnp.dot(emb.astype(bf16), wlm_ref[...],
                              preferred_element_type=f32) + blm_ref[...])

    # ---- CLS extraction + LinearPooler (Linear -> ReLU -> Linear) -----------
    srow = jax.lax.broadcasted_iota(jnp.int32, (NB, NTOK), 0)
    scol = jax.lax.broadcasted_iota(jnp.int32, (NB, NTOK), 1)
    sel = jnp.where(scol == srow * SEQ, 1.0, 0.0)               # (NB, NTOK) f32
    cls = jnp.dot(sel, hidden, preferred_element_type=f32)      # (NB, D)
    h1 = jnp.maximum(jnp.dot(cls.astype(bf16), wp1_ref[...],
                             preferred_element_type=f32) + bp1_ref[...], 0.0)
    reps = jnp.dot(h1.astype(bf16), wp2_ref[...],
                   preferred_element_type=f32) + bp2_ref[...]   # (NB, D)
    reps_ref[...] = reps

    # ---- contrastive scores + fused cross entropy ---------------------------
    # gram[i, j] = reps_i . reps_j ; query rows are 0..BQ-1, keys BQ..NB-1.
    gram = jax.lax.dot_general(reps, reps, (((1,), (1,)), ((), ())),
                               preferred_element_type=f32)      # (NB, NB)
    gram_ref[...] = gram
    gcol = jax.lax.broadcasted_iota(jnp.int32, (NB, NB), 1)
    key_logits = jnp.where(gcol >= BQ, gram, NEG)               # only key cols
    m = jnp.max(key_logits, axis=-1, keepdims=True)
    lse = m + jnp.log(jnp.sum(jnp.exp(key_logits - m), axis=-1, keepdims=True))
    tgt = tgt_ref[...]                                          # (NB, 1) i32
    picked = jnp.sum(jnp.where(gcol == tgt, gram, 0.0), axis=-1, keepdims=True)
    rowq = jax.lax.broadcasted_iota(jnp.int32, (NB, 1), 0) < BQ
    ce = jnp.sum(jnp.where(rowq, lse - picked, 0.0)) / float(BQ)

    # ---- MLM head (BertLMPredictionHead) + fused cross entropy --------------
    t = jnp.dot(hidden.astype(bf16), wt_ref[...],
                preferred_element_type=f32) + bt_ref[...]
    t = _gelu(t)
    mu = jnp.mean(t, axis=-1, keepdims=True)
    var = jnp.mean((t - mu) * (t - mu), axis=-1, keepdims=True)
    t = (t - mu) * jax.lax.rsqrt(var + 1e-12) * g_ref[...] + beta_ref[...]
    logits = jnp.dot(t.astype(bf16), wd_ref[...],
                     preferred_element_type=f32) + bd_ref[...]  # (NTOK, V)

    labels = mlm_ref[...]                                       # (NTOK, 1) i32
    m2 = jnp.max(logits, axis=-1, keepdims=True)
    lse2 = m2 + jnp.log(jnp.sum(jnp.exp(logits - m2), axis=-1, keepdims=True))
    picked2 = jnp.sum(jnp.where(vcol == labels, logits, 0.0),
                      axis=-1, keepdims=True)
    valid = (labels != -100).astype(f32)                        # ignore_index
    per = (lse2 - picked2) * valid
    isq = (jax.lax.broadcasted_iota(jnp.int32, (NTOK, 1), 0)
           < NQ_TOK).astype(f32)
    q_loss = jnp.sum(per * isq) / jnp.maximum(jnp.sum(valid * isq), 1.0)
    k_loss = (jnp.sum(per * (1.0 - isq))
              / jnp.maximum(jnp.sum(valid * (1.0 - isq)), 1.0))

    # ---- single small loss output: [ce, q_mlm, k_mlm, 0] --------------------
    lane = jax.lax.broadcasted_iota(jnp.int32, (1, 4), 1)
    losses_ref[...] = (jnp.where(lane == 0, 1.0, 0.0) * ce
                       + jnp.where(lane == 1, 1.0, 0.0) * q_loss
                       + jnp.where(lane == 2, 1.0, 0.0) * k_loss)


# ----------------------------- wrapper ----------------------------------------
@jax.jit
def dense_lm_model_forward(params, query_ids, key_ids, labels,
                           q_mlm_labels, k_mlm_labels):
    # pack queries + keys so the encoder weights are streamed once
    ids = jnp.concatenate([query_ids, key_ids], axis=0)
    ids = ids.reshape(-1, 1).astype(jnp.int32)                  # (NTOK, 1)
    mlm = jnp.concatenate([q_mlm_labels.reshape(-1),
                           k_mlm_labels.reshape(-1)])
    mlm = mlm.reshape(-1, 1).astype(jnp.int32)                  # (NTOK, 1)

    target = labels.astype(jnp.int32)
    if BQ != BP:                                                # scores non-square
        target = target * (1 + HN_NUM)
    # contrastive targets mapped into gram-column space; -1 for key rows
    tgt_ext = jnp.concatenate([BQ + target,
                               jnp.full((BP,), -1, jnp.int32)]).reshape(-1, 1)

    bf = lambda w: w.astype(jnp.bfloat16)
    row = lambda b: b.reshape(1, -1)

    gram, losses, reps = pl.pallas_call(
        fused_forward_kernel,
        out_shape=(jax.ShapeDtypeStruct((NB, NB), jnp.float32),
                   jax.ShapeDtypeStruct((1, 4), jnp.float32),
                   jax.ShapeDtypeStruct((NB, D), jnp.float32)),
        in_specs=_vmem_specs(16),
        out_specs=tuple(_vmem_specs(3)),
    )(ids, tgt_ext, mlm,
      bf(params["embed"]),
      bf(params["W_lm"]), row(params["b_lm"]),
      bf(params["W_p1"]), row(params["b_p1"]),
      bf(params["W_p2"]), row(params["b_p2"]),
      bf(params["W_t"]), row(params["b_t"]),
      row(params["ln_g"]), row(params["ln_b"]),
      bf(params["W_d"]), row(params["b_d"]))

    scores = gram[:BQ, BQ:]                                     # (BQ, BP)
    ce, q_mlm_loss, k_mlm_loss = losses[0, 0], losses[0, 1], losses[0, 2]
    loss = ce + MLM_WEIGHT * (q_mlm_loss + k_mlm_loss)
    q_reps, p_reps = reps[:BQ], reps[BQ:]
    return {"loss": loss, "scores": scores, "target": target,
            "q_reps": q_reps, "p_reps": p_reps}


# ----------------------------- params -----------------------------------------
def init_params(key):
    ks = jax.random.split(key, 10)
    s = 0.02
    return {
        # synthetic LM: embedding + one tanh projection producing last_hidden_state
        "embed": s * jax.random.normal(ks[0], (V, D), jnp.float32),
        "W_lm": s * jax.random.normal(ks[1], (D, D), jnp.float32),
        "b_lm": jnp.zeros((D,), jnp.float32),
        # LinearPooler: Linear(D,D) -> ReLU -> Linear(D,D)
        "W_p1": s * jax.random.normal(ks[2], (D, D), jnp.float32),
        "b_p1": jnp.zeros((D,), jnp.float32),
        "W_p2": s * jax.random.normal(ks[3], (D, D), jnp.float32),
        "b_p2": jnp.zeros((D,), jnp.float32),
        # mlm_head (BertLMPredictionHead): transform + layernorm + decoder
        "W_t": s * jax.random.normal(ks[4], (D, D), jnp.float32),
        "b_t": jnp.zeros((D,), jnp.float32),
        "ln_g": jnp.ones((D,), jnp.float32),
        "ln_b": jnp.zeros((D,), jnp.float32),
        "W_d": s * jax.random.normal(ks[5], (D, V), jnp.float32),
        "b_d": jnp.zeros((V,), jnp.float32),
    }


# ----------------------------- numpy reference --------------------------------
def _np_gelu(x):
    return 0.5 * x * (1.0 + np.tanh(math.sqrt(2.0 / math.pi)
                                    * (x + 0.044715 * x ** 3)))


def _np_ce(logits, labels):
    m = logits.max(-1, keepdims=True)
    lse = (m + np.log(np.exp(logits - m).sum(-1, keepdims=True)))[:, 0]
    mask = labels != -100
    safe = np.where(mask, labels, 0)
    picked = logits[np.arange(logits.shape[0]), safe]
    per = (lse - picked) * mask
    return per.sum() / max(mask.sum(), 1)


def reference_forward(params, query_ids, key_ids, labels,
                      q_mlm_labels, k_mlm_labels):
    p = {k: np.asarray(v, np.float32) for k, v in params.items()}

    def enc(ids):
        emb = p["embed"][np.asarray(ids)]
        hid = np.tanh(emb @ p["W_lm"] + p["b_lm"])
        cls = hid[:, 0]
        h = np.maximum(cls @ p["W_p1"] + p["b_p1"], 0.0)
        reps = h @ p["W_p2"] + p["b_p2"]
        return hid, reps

    def head(hid):
        t = _np_gelu(hid.reshape(-1, D) @ p["W_t"] + p["b_t"])
        mu = t.mean(-1, keepdims=True)
        var = ((t - mu) ** 2).mean(-1, keepdims=True)
        t = (t - mu) / np.sqrt(var + 1e-12) * p["ln_g"] + p["ln_b"]
        return t @ p["W_d"] + p["b_d"]

    q_hid, q_reps = enc(query_ids)
    p_hid, p_reps = enc(key_ids)
    scores = q_reps @ p_reps.T
    target = np.asarray(labels)
    if scores.shape[0] != scores.shape[1]:
        target = target * (1 + HN_NUM)
    loss = _np_ce(scores, target)
    loss += MLM_WEIGHT * (_np_ce(head(q_hid), np.asarray(q_mlm_labels).reshape(-1))
                          + _np_ce(head(p_hid), np.asarray(k_mlm_labels).reshape(-1)))
    return loss, scores


# ----------------------------- main --------------------------------------------
if __name__ == "__main__":
    key = jax.random.PRNGKey(0)
    kp, kq, kk, kl1, kl2, km1, km2 = jax.random.split(key, 7)

    params = init_params(kp)

    query_ids = jax.random.randint(kq, (BQ, SEQ), 0, V, dtype=jnp.int32)
    key_ids = jax.random.randint(kk, (BP, SEQ), 0, V, dtype=jnp.int32)
    labels = jnp.arange(BQ, dtype=jnp.int32)   # query i matches passage i*(1+hn_num)

    # MLM labels: mostly -100 (ignored), some valid token ids
    q_mask = jax.random.bernoulli(km1, 0.3, (BQ, SEQ))
    k_mask = jax.random.bernoulli(km2, 0.3, (BP, SEQ))
    q_mlm_labels = jnp.where(q_mask, jax.random.randint(kl1, (BQ, SEQ), 0, V),
                             -100).astype(jnp.int32)
    k_mlm_labels = jnp.where(k_mask, jax.random.randint(kl2, (BP, SEQ), 0, V),
                             -100).astype(jnp.int32)
    # guarantee at least one valid label per side
    q_mlm_labels = q_mlm_labels.at[0, 0].set(1)
    k_mlm_labels = k_mlm_labels.at[0, 0].set(1)

    out = dense_lm_model_forward(params, query_ids, key_ids, labels,
                                 q_mlm_labels, k_mlm_labels)
    jax.block_until_ready(out["loss"])

    ref_loss, ref_scores = reference_forward(params, query_ids, key_ids, labels,
                                             q_mlm_labels, k_mlm_labels)

    # bf16 MXU operands (f32 accumulation) -> slightly relaxed tolerance
    np.testing.assert_allclose(np.asarray(out["scores"]), ref_scores,
                               rtol=2e-2, atol=2e-2)
    np.testing.assert_allclose(float(out["loss"]), float(ref_loss),
                               rtol=2e-2, atol=2e-2)
    assert np.isfinite(float(out["loss"]))

    print("KERNEL_OK")
</pallas_src>

<mosaic_0001>
module attributes {stable_mosaic.version = 11 : i64} {
  func.func @fused_forward_kernel(%arg0: memref<96x1xi32, #tpu.memory_space<vmem>>, %arg1: memref<12x1xi32, #tpu.memory_space<vmem>>, %arg2: memref<96x1xi32, #tpu.memory_space<vmem>>, %arg3: memref<256x128xbf16, #tpu.memory_space<vmem>>, %arg4: memref<128x128xbf16, #tpu.memory_space<vmem>>, %arg5: memref<1x128xf32, #tpu.memory_space<vmem>>, %arg6: memref<128x128xbf16, #tpu.memory_space<vmem>>, %arg7: memref<1x128xf32, #tpu.memory_space<vmem>>, %arg8: memref<128x128xbf16, #tpu.memory_space<vmem>>, %arg9: memref<1x128xf32, #tpu.memory_space<vmem>>, %arg10: memref<128x128xbf16, #tpu.memory_space<vmem>>, %arg11: memref<1x128xf32, #tpu.memory_space<vmem>>, %arg12: memref<1x128xf32, #tpu.memory_space<vmem>>, %arg13: memref<1x128xf32, #tpu.memory_space<vmem>>, %arg14: memref<128x256xbf16, #tpu.memory_space<vmem>>, %arg15: memref<1x256xf32, #tpu.memory_space<vmem>>, %arg16: memref<12x12xf32, #tpu.memory_space<vmem>>, %arg17: memref<1x4xf32, #tpu.memory_space<vmem>>, %arg18: memref<12x128xf32, #tpu.memory_space<vmem>>) attributes {dimension_semantics = [], scalar_prefetch = 0 : i64, scratch_operands = 0 : i64, tpu.core_type = #tpu.core_type<tc>} {
    %c0 = arith.constant 0 : index
    %c0_0 = arith.constant 0 : index
    %0 = vector.load %arg0[%c0, %c0_0] : memref<96x1xi32, #tpu.memory_space<vmem>>, vector<96x1xi32>
    %1 = tpu.iota {dimensions = array<i32: 1>} : vector<96x256xi32>
    %2 = vector.broadcast %0 : vector<96x1xi32> to vector<96x256xi32>
    %3 = arith.cmpi eq, %1, %2 : vector<96x256xi32>
    %cst = arith.constant 1.000000e+00 : f32
    %cst_1 = arith.constant 0.000000e+00 : f32
    %4 = vector.broadcast %cst : f32 to vector<96x256xf32>
    %5 = vector.broadcast %cst_1 : f32 to vector<96x256xf32>
    %6 = arith.select %3, %4, %5 : vector<96x256xi1>, vector<96x256xf32>
    %7 = arith.truncf %6 : vector<96x256xf32> to vector<96x256xbf16>
    %c0_2 = arith.constant 0 : index
    %c0_3 = arith.constant 0 : index
    %8 = vector.load %arg3[%c0_2, %c0_3] : memref<256x128xbf16, #tpu.memory_space<vmem>>, vector<256x128xbf16>
    %cst_4 = arith.constant dense<0.000000e+00> : vector<96x128xf32>
    %9 = tpu.matmul %7, %8, %cst_4 {dimension_numbers = #tpu.dot_dimension_numbers<[1], [0], [0], [1], [0, 0, 1, 1], [], []>} : vector<96x256xbf16>, vector<256x128xbf16>, vector<96x128xf32> -> vector<96x128xf32>
    %10 = arith.truncf %9 : vector<96x128xf32> to vector<96x128xbf16>
    %c0_5 = arith.constant 0 : index
    %c0_6 = arith.constant 0 : index
    %11 = vector.load %arg4[%c0_5, %c0_6] : memref<128x128xbf16, #tpu.memory_space<vmem>>, vector<128x128xbf16>
    %cst_7 = arith.constant dense<0.000000e+00> : vector<96x128xf32>
    %12 = tpu.matmul %10, %11, %cst_7 {dimension_numbers = #tpu.dot_dimension_numbers<[1], [0], [0], [1], [0, 0, 1, 1], [], []>} : vector<96x128xbf16>, vector<128x128xbf16>, vector<96x128xf32> -> vector<96x128xf32>
    %c0_8 = arith.constant 0 : index
    %c0_9 = arith.constant 0 : index
    %13 = vector.load %arg5[%c0_8, %c0_9] : memref<1x128xf32, #tpu.memory_space<vmem>>, vector<1x128xf32>
    %14 = vector.broadcast %13 : vector<1x128xf32> to vector<96x128xf32>
    %15 = arith.addf %12, %14 : vector<96x128xf32>
    %16 = math.tanh %15 : vector<96x128xf32>
    %17 = tpu.iota {dimensions = array<i32: 0>} : vector<12x96xi32>
    %18 = tpu.iota {dimensions = array<i32: 1>} : vector<12x96xi32>
    %c8_i32 = arith.constant 8 : i32
    %19 = vector.broadcast %c8_i32 : i32 to vector<12x96xi32>
    %20 = arith.muli %17, %19 : vector<12x96xi32>
    %21 = arith.cmpi eq, %18, %20 : vector<12x96xi32>
    %cst_10 = arith.constant 1.000000e+00 : f32
    %cst_11 = arith.constant 0.000000e+00 : f32
    %22 = vector.broadcast %cst_10 : f32 to vector<12x96xf32>
    %23 = vector.broadcast %cst_11 : f32 to vector<12x96xf32>
    %24 = arith.select %21, %22, %23 : vector<12x96xi1>, vector<12x96xf32>
    %cst_12 = arith.constant dense<0.000000e+00> : vector<12x128xf32>
    %25 = tpu.matmul %24, %16, %cst_12 {dimension_numbers = #tpu.dot_dimension_numbers<[1], [0], [0], [1], [0, 0, 1, 1], [], []>} : vector<12x96xf32>, vector<96x128xf32>, vector<12x128xf32> -> vector<12x128xf32>
    %26 = arith.truncf %25 : vector<12x128xf32> to vector<12x128xbf16>
    %c0_13 = arith.constant 0 : index
    %c0_14 = arith.constant 0 : index
    %27 = vector.load %arg6[%c0_13, %c0_14] : memref<128x128xbf16, #tpu.memory_space<vmem>>, vector<128x128xbf16>
    %cst_15 = arith.constant dense<0.000000e+00> : vector<12x128xf32>
    %28 = tpu.matmul %26, %27, %cst_15 {dimension_numbers = #tpu.dot_dimension_numbers<[1], [0], [0], [1], [0, 0, 1, 1], [], []>} : vector<12x128xbf16>, vector<128x128xbf16>, vector<12x128xf32> -> vector<12x128xf32>
    %c0_16 = arith.constant 0 : index
    %c0_17 = arith.constant 0 : index
    %29 = vector.load %arg7[%c0_16, %c0_17] : memref<1x128xf32, #tpu.memory_space<vmem>>, vector<1x128xf32>
    %30 = vector.broadcast %29 : vector<1x128xf32> to vector<12x128xf32>
    %31 = arith.addf %28, %30 : vector<12x128xf32>
    %cst_18 = arith.constant 0.000000e+00 : f32
    %32 = vector.broadcast %cst_18 : f32 to vector<12x128xf32>
    %33 = arith.maximumf %31, %32 : vector<12x128xf32>
    %34 = arith.truncf %33 : vector<12x128xf32> to vector<12x128xbf16>
    %c0_19 = arith.constant 0 : index
    %c0_20 = arith.constant 0 : index
    %35 = vector.load %arg8[%c0_19, %c0_20] : memref<128x128xbf16, #tpu.memory_space<vmem>>, vector<128x128xbf16>
    %cst_21 = arith.constant dense<0.000000e+00> : vector<12x128xf32>
    %36 = tpu.matmul %34, %35, %cst_21 {dimension_numbers = #tpu.dot_dimension_numbers<[1], [0], [0], [1], [0, 0, 1, 1], [], []>} : vector<12x128xbf16>, vector<128x128xbf16>, vector<12x128xf32> -> vector<12x128xf32>
    %c0_22 = arith.constant 0 : index
    %c0_23 = arith.constant 0 : index
    %37 = vector.load %arg9[%c0_22, %c0_23] : memref<1x128xf32, #tpu.memory_space<vmem>>, vector<1x128xf32>
    %38 = vector.broadcast %37 : vector<1x128xf32> to vector<12x128xf32>
    %39 = arith.addf %36, %38 : vector<12x128xf32>
    %c0_24 = arith.constant 0 : index
    %c0_25 = arith.constant 0 : index
    %40 = vector.load %arg18[%c0_24, %c0_25] : memref<12x128xf32, #tpu.memory_space<vmem>>, vector<12x128xf32>
    tpu.vector_store %arg18[%c0_24, %c0_25], %39 {strides = array<i32>} : memref<12x128xf32, #tpu.memory_space<vmem>>, vector<12x128xf32>,
    %cst_26 = arith.constant dense<0.000000e+00> : vector<12x12xf32>
    %41 = tpu.matmul %39, %39, %cst_26 {dimension_numbers = #tpu.dot_dimension_numbers<[1], [1], [0], [0], [0, 0, 1, 0], [], []>} : vector<12x128xf32>, vector<12x128xf32>, vector<12x12xf32> -> vector<12x12xf32>
    %c0_27 = arith.constant 0 : index
    %c0_28 = arith.constant 0 : index
    %42 = vector.load %arg16[%c0_27, %c0_28] : memref<12x12xf32, #tpu.memory_space<vmem>>, vector<12x12xf32>
    tpu.vector_store %arg16[%c0_27, %c0_28], %41 {strides = array<i32>} : memref<12x12xf32, #tpu.memory_space<vmem>>, vector<12x12xf32>,
    %43 = tpu.iota {dimensions = array<i32: 1>} : vector<12x12xi32>
    %c4_i32 = arith.constant 4 : i32
    %44 = vector.broadcast %c4_i32 : i32 to vector<12x12xi32>
    %45 = arith.cmpi sge, %43, %44 : vector<12x12xi32>
    %cst_29 = arith.constant -1.000000e+30 : f32
    %46 = vector.broadcast %cst_29 : f32 to vector<12x12xf32>
    %47 = arith.select %45, %41, %46 : vector<12x12xi1>, vector<12x12xf32>
    %cst_30 = arith.constant dense<0xFF800000> : vector<12xf32>
    %48 = vector.multi_reduction <maximumf>, %47, %cst_30 [1] : vector<12x12xf32> to vector<12xf32>
    %49 = vector.shape_cast %48 : vector<12xf32> to vector<12x1xf32>
    %50 = vector.broadcast %49 : vector<12x1xf32> to vector<12x12xf32>
    %51 = arith.subf %47, %50 : vector<12x12xf32>
    %52 = math.exp %51 : vector<12x12xf32>
    %cst_31 = arith.constant dense<0.000000e+00> : vector<12xf32>
    %53 = vector.multi_reduction <add>, %52, %cst_31 [1] : vector<12x12xf32> to vector<12xf32>
    %54 = vector.shape_cast %53 : vector<12xf32> to vector<12x1xf32>
    %55 = math.log %54 : vector<12x1xf32>
    %56 = arith.addf %49, %55 : vector<12x1xf32>
    %c0_32 = arith.constant 0 : index
    %c0_33 = arith.constant 0 : index
    %57 = vector.load %arg1[%c0_32, %c0_33] : memref<12x1xi32, #tpu.memory_space<vmem>>, vector<12x1xi32>
    %58 = vector.broadcast %57 : vector<12x1xi32> to vector<12x12xi32>
    %59 = arith.cmpi eq, %43, %58 : vector<12x12xi32>
    %cst_34 = arith.constant 0.000000e+00 : f32
    %60 = vector.broadcast %cst_34 : f32 to vector<12x12xf32>
    %61 = arith.select %59, %41, %60 : vector<12x12xi1>, vector<12x12xf32>
    %cst_35 = arith.constant dense<0.000000e+00> : vector<12xf32>
    %62 = vector.multi_reduction <add>, %61, %cst_35 [1] : vector<12x12xf32> to vector<12xf32>
    %63 = vector.shape_cast %62 : vector<12xf32> to vector<12x1xf32>
    %64 = tpu.iota {dimensions = array<i32: 0>} : vector<12x1xi32>
    %c4_i32_36 = arith.constant 4 : i32
    %65 = vector.broadcast %c4_i32_36 : i32 to vector<12x1xi32>
    %66 = arith.cmpi slt, %64, %65 : vector<12x1xi32>
    %67 = arith.subf %56, %63 : vector<12x1xf32>
    %cst_37 = arith.constant 0.000000e+00 : f32
    %68 = vector.broadcast %cst_37 : f32 to vector<12x1xf32>
    %69 = arith.select %66, %67, %68 : vector<12x1xi1>, vector<12x1xf32>
    %70 = vector.shape_cast %69 : vector<12x1xf32> to vector<1x12x1xf32>
    %cst_38 = arith.constant dense<0.000000e+00> : vector<1xf32>
    %71 = vector.multi_reduction <add>, %70, %cst_38 [1, 2] : vector<1x12x1xf32> to vector<1xf32>
    %72 = vector.shape_cast %71 : vector<1xf32> to vector<1x1x1xf32>
    %73 = vector.extract %72[0, 0, 0] : f32 from vector<1x1x1xf32>
    %cst_39 = arith.constant 4.000000e+00 : f32
    %74 = arith.divf %73, %cst_39 : f32
    %75 = arith.truncf %16 : vector<96x128xf32> to vector<96x128xbf16>
    %c0_40 = arith.constant 0 : index
    %c0_41 = arith.constant 0 : index
    %76 = vector.load %arg10[%c0_40, %c0_41] : memref<128x128xbf16, #tpu.memory_space<vmem>>, vector<128x128xbf16>
    %cst_42 = arith.constant dense<0.000000e+00> : vector<96x128xf32>
    %77 = tpu.matmul %75, %76, %cst_42 {dimension_numbers = #tpu.dot_dimension_numbers<[1], [0], [0], [1], [0, 0, 1, 1], [], []>} : vector<96x128xbf16>, vector<128x128xbf16>, vector<96x128xf32> -> vector<96x128xf32>
    %c0_43 = arith.constant 0 : index
    %c0_44 = arith.constant 0 : index
    %78 = vector.load %arg11[%c0_43, %c0_44] : memref<1x128xf32, #tpu.memory_space<vmem>>, vector<1x128xf32>
    %79 = vector.broadcast %78 : vector<1x128xf32> to vector<96x128xf32>
    %80 = arith.addf %77, %79 : vector<96x128xf32>
    %cst_45 = arith.constant 5.000000e-01 : f32
    %81 = vector.broadcast %cst_45 : f32 to vector<96x128xf32>
    %82 = arith.mulf %81, %80 : vector<96x128xf32>
    %cst_46 = arith.constant 0.636619746 : f32
    %83 = math.sqrt %cst_46 : f32
    %cst_47 = arith.constant 4.471500e-02 : f32
    %84 = vector.broadcast %cst_47 : f32 to vector<96x128xf32>
    %85 = arith.mulf %84, %80 : vector<96x128xf32>
    %86 = arith.mulf %85, %80 : vector<96x128xf32>
    %87 = arith.mulf %86, %80 : vector<96x128xf32>
    %88 = arith.addf %80, %87 : vector<96x128xf32>
    %89 = vector.broadcast %83 : f32 to vector<96x128xf32>
    %90 = arith.mulf %89, %88 : vector<96x128xf32>
    %91 = math.tanh %90 : vector<96x128xf32>
    %cst_48 = arith.constant 1.000000e+00 : f32
    %92 = vector.broadcast %cst_48 : f32 to vector<96x128xf32>
    %93 = arith.addf %92, %91 : vector<96x128xf32>
    %94 = arith.mulf %82, %93 : vector<96x128xf32>
    %cst_49 = arith.constant dense<0.000000e+00> : vector<96xf32>
    %95 = vector.multi_reduction <add>, %94, %cst_49 [1] : vector<96x128xf32> to vector<96xf32>
    %96 = vector.shape_cast %95 : vector<96xf32> to vector<96x1xf32>
    %cst_50 = arith.constant 1.280000e+02 : f32
    %97 = vector.broadcast %cst_50 : f32 to vector<96x1xf32>
    %98 = arith.divf %96, %97 : vector<96x1xf32>
    %99 = vector.broadcast %98 : vector<96x1xf32> to vector<96x128xf32>
    %100 = arith.subf %94, %99 : vector<96x128xf32>
    %101 = vector.broadcast %98 : vector<96x1xf32> to vector<96x128xf32>
    %102 = arith.subf %94, %101 : vector<96x128xf32>
    %103 = arith.mulf %100, %102 : vector<96x128xf32>
    %cst_51 = arith.constant dense<0.000000e+00> : vector<96xf32>
    %104 = vector.multi_reduction <add>, %103, %cst_51 [1] : vector<96x128xf32> to vector<96xf32>
    %105 = vector.shape_cast %104 : vector<96xf32> to vector<96x1xf32>
    %cst_52 = arith.constant 1.280000e+02 : f32
    %106 = vector.broadcast %cst_52 : f32 to vector<96x1xf32>
    %107 = arith.divf %105, %106 : vector<96x1xf32>
    %108 = vector.broadcast %98 : vector<96x1xf32> to vector<96x128xf32>
    %109 = arith.subf %94, %108 : vector<96x128xf32>
    %cst_53 = arith.constant 9.99999996E-13 : f32
    %110 = vector.broadcast %cst_53 : f32 to vector<96x1xf32>
    %111 = arith.addf %107, %110 : vector<96x1xf32>
    %112 = math.rsqrt %111 : vector<96x1xf32>
    %113 = vector.broadcast %112 : vector<96x1xf32> to vector<96x128xf32>
    %114 = arith.mulf %109, %113 : vector<96x128xf32>
    %c0_54 = arith.constant 0 : index
    %c0_55 = arith.constant 0 : index
    %115 = vector.load %arg12[%c0_54, %c0_55] : memref<1x128xf32, #tpu.memory_space<vmem>>, vector<1x128xf32>
    %116 = vector.broadcast %115 : vector<1x128xf32> to vector<96x128xf32>
    %117 = arith.mulf %114, %116 : vector<96x128xf32>
    %c0_56 = arith.constant 0 : index
    %c0_57 = arith.constant 0 : index
    %118 = vector.load %arg13[%c0_56, %c0_57] : memref<1x128xf32, #tpu.memory_space<vmem>>, vector<1x128xf32>
    %119 = vector.broadcast %118 : vector<1x128xf32> to vector<96x128xf32>
    %120 = arith.addf %117, %119 : vector<96x128xf32>
    %121 = arith.truncf %120 : vector<96x128xf32> to vector<96x128xbf16>
    %c0_58 = arith.constant 0 : index
    %c0_59 = arith.constant 0 : index
    %122 = vector.load %arg14[%c0_58, %c0_59] : memref<128x256xbf16, #tpu.memory_space<vmem>>, vector<128x256xbf16>
    %cst_60 = arith.constant dense<0.000000e+00> : vector<96x256xf32>
    %123 = tpu.matmul %121, %122, %cst_60 {dimension_numbers = #tpu.dot_dimension_numbers<[1], [0], [0], [1], [0, 0, 1, 1], [], []>} : vector<96x128xbf16>, vector<128x256xbf16>, vector<96x256xf32> -> vector<96x256xf32>
    %c0_61 = arith.constant 0 : index
    %c0_62 = arith.constant 0 : index
    %124 = vector.load %arg15[%c0_61, %c0_62] : memref<1x256xf32, #tpu.memory_space<vmem>>, vector<1x256xf32>
    %125 = vector.broadcast %124 : vector<1x256xf32> to vector<96x256xf32>
    %126 = arith.addf %123, %125 : vector<96x256xf32>
    %c0_63 = arith.constant 0 : index
    %c0_64 = arith.constant 0 : index
    %127 = vector.load %arg2[%c0_63, %c0_64] : memref<96x1xi32, #tpu.memory_space<vmem>>, vector<96x1xi32>
    %cst_65 = arith.constant dense<0xFF800000> : vector<96xf32>
    %128 = vector.multi_reduction <maximumf>, %126, %cst_65 [1] : vector<96x256xf32> to vector<96xf32>
    %129 = vector.shape_cast %128 : vector<96xf32> to vector<96x1xf32>
    %130 = vector.broadcast %129 : vector<96x1xf32> to vector<96x256xf32>
    %131 = arith.subf %126, %130 : vector<96x256xf32>
    %132 = math.exp %131 : vector<96x256xf32>
    %cst_66 = arith.constant dense<0.000000e+00> : vector<96xf32>
    %133 = vector.multi_reduction <add>, %132, %cst_66 [1] : vector<96x256xf32> to vector<96xf32>
    %134 = vector.shape_cast %133 : vector<96xf32> to vector<96x1xf32>
    %135 = math.log %134 : vector<96x1xf32>
    %136 = arith.addf %129, %135 : vector<96x1xf32>
    %137 = vector.broadcast %127 : vector<96x1xi32> to vector<96x256xi32>
    %138 = arith.cmpi eq, %1, %137 : vector<96x256xi32>
    %cst_67 = arith.constant 0.000000e+00 : f32
    %139 = vector.broadcast %cst_67 : f32 to vector<96x256xf32>
    %140 = arith.select %138, %126, %139 : vector<96x256xi1>, vector<96x256xf32>
    %cst_68 = arith.constant dense<0.000000e+00> : vector<96xf32>
    %141 = vector.multi_reduction <add>, %140, %cst_68 [1] : vector<96x256xf32> to vector<96xf32>
    %142 = vector.shape_cast %141 : vector<96xf32> to vector<96x1xf32>
    %c-100_i32 = arith.constant -100 : i32
    %143 = vector.broadcast %c-100_i32 : i32 to vector<96x1xi32>
    %144 = arith.cmpi ne, %127, %143 : vector<96x1xi32>
    %145 = arith.extui %144 : vector<96x1xi1> to vector<96x1xi32>
    %146 = arith.sitofp %145 : vector<96x1xi32> to vector<96x1xf32>
    %147 = arith.subf %136, %142 : vector<96x1xf32>
    %148 = arith.mulf %147, %146 : vector<96x1xf32>
    %149 = tpu.iota {dimensions = array<i32: 0>} : vector<96x1xi32>
    %c32_i32 = arith.constant 32 : i32
    %150 = vector.broadcast %c32_i32 : i32 to vector<96x1xi32>
    %151 = arith.cmpi slt, %149, %150 : vector<96x1xi32>
    %152 = arith.extui %151 : vector<96x1xi1> to vector<96x1xi32>
    %153 = arith.sitofp %152 : vector<96x1xi32> to vector<96x1xf32>
    %154 = arith.mulf %148, %153 : vector<96x1xf32>
    %155 = vector.shape_cast %154 : vector<96x1xf32> to vector<1x96x1xf32>
    %cst_69 = arith.constant dense<0.000000e+00> : vector<1xf32>
    %156 = vector.multi_reduction <add>, %155, %cst_69 [1, 2] : vector<1x96x1xf32> to vector<1xf32>
    %157 = vector.shape_cast %156 : vector<1xf32> to vector<1x1x1xf32>
    %158 = vector.extract %157[0, 0, 0] : f32 from vector<1x1x1xf32>
    %159 = arith.mulf %146, %153 : vector<96x1xf32>
    %160 = vector.shape_cast %159 : vector<96x1xf32> to vector<1x96x1xf32>
    %cst_70 = arith.constant dense<0.000000e+00> : vector<1xf32>
    %161 = vector.multi_reduction <add>, %160, %cst_70 [1, 2] : vector<1x96x1xf32> to vector<1xf32>
    %162 = vector.shape_cast %161 : vector<1xf32> to vector<1x1x1xf32>
    %163 = vector.extract %162[0, 0, 0] : f32 from vector<1x1x1xf32>
    %cst_71 = arith.constant 1.000000e+00 : f32
    %164 = arith.maximumf %163, %cst_71 : f32
    %165 = arith.divf %158, %164 : f32
    %cst_72 = arith.constant 1.000000e+00 : f32
    %166 = vector.broadcast %cst_72 : f32 to vector<96x1xf32>
    %167 = arith.subf %166, %153 : vector<96x1xf32>
    %168 = arith.mulf %148, %167 : vector<96x1xf32>
    %169 = vector.shape_cast %168 : vector<96x1xf32> to vector<1x96x1xf32>
    %cst_73 = arith.constant dense<0.000000e+00> : vector<1xf32>
    %170 = vector.multi_reduction <add>, %169, %cst_73 [1, 2] : vector<1x96x1xf32> to vector<1xf32>
    %171 = vector.shape_cast %170 : vector<1xf32> to vector<1x1x1xf32>
    %172 = vector.extract %171[0, 0, 0] : f32 from vector<1x1x1xf32>
    %cst_74 = arith.constant 1.000000e+00 : f32
    %173 = vector.broadcast %cst_74 : f32 to vector<96x1xf32>
    %174 = arith.subf %173, %153 : vector<96x1xf32>
    %175 = arith.mulf %146, %174 : vector<96x1xf32>
    %176 = vector.shape_cast %175 : vector<96x1xf32> to vector<1x96x1xf32>
    %cst_75 = arith.constant dense<0.000000e+00> : vector<1xf32>
    %177 = vector.multi_reduction <add>, %176, %cst_75 [1, 2] : vector<1x96x1xf32> to vector<1xf32>
    %178 = vector.shape_cast %177 : vector<1xf32> to vector<1x1x1xf32>
    %179 = vector.extract %178[0, 0, 0] : f32 from vector<1x1x1xf32>
    %cst_76 = arith.constant 1.000000e+00 : f32
    %180 = arith.maximumf %179, %cst_76 : f32
    %181 = arith.divf %172, %180 : f32
    %182 = tpu.iota {dimensions = array<i32: 1>} : vector<1x4xi32>
    %c0_i32 = arith.constant 0 : i32
    %183 = vector.broadcast %c0_i32 : i32 to vector<1x4xi32>
    %184 = arith.cmpi eq, %182, %183 : vector<1x4xi32>
    %cst_77 = arith.constant 1.000000e+00 : f32
    %cst_78 = arith.constant 0.000000e+00 : f32
    %185 = vector.broadcast %cst_77 : f32 to vector<1x4xf32>
    %186 = vector.broadcast %cst_78 : f32 to vector<1x4xf32>
    %187 = arith.select %184, %185, %186 : vector<1x4xi1>, vector<1x4xf32>
    %188 = vector.broadcast %74 : f32 to vector<1x4xf32>
    %189 = arith.mulf %187, %188 : vector<1x4xf32>
    %c1_i32 = arith.constant 1 : i32
    %190 = vector.broadcast %c1_i32 : i32 to vector<1x4xi32>
    %191 = arith.cmpi eq, %182, %190 : vector<1x4xi32>
    %cst_79 = arith.constant 1.000000e+00 : f32
    %cst_80 = arith.constant 0.000000e+00 : f32
    %192 = vector.broadcast %cst_79 : f32 to vector<1x4xf32>
    %193 = vector.broadcast %cst_80 : f32 to vector<1x4xf32>
    %194 = arith.select %191, %192, %193 : vector<1x4xi1>, vector<1x4xf32>
    %195 = vector.broadcast %165 : f32 to vector<1x4xf32>
    %196 = arith.mulf %194, %195 : vector<1x4xf32>
    %197 = arith.addf %189, %196 : vector<1x4xf32>
    %c2_i32 = arith.constant 2 : i32
    %198 = vector.broadcast %c2_i32 : i32 to vector<1x4xi32>
    %199 = arith.cmpi eq, %182, %198 : vector<1x4xi32>
    %cst_81 = arith.constant 1.000000e+00 : f32
    %cst_82 = arith.constant 0.000000e+00 : f32
    %200 = vector.broadcast %cst_81 : f32 to vector<1x4xf32>
    %201 = vector.broadcast %cst_82 : f32 to vector<1x4xf32>
    %202 = arith.select %199, %200, %201 : vector<1x4xi1>, vector<1x4xf32>
    %203 = vector.broadcast %181 : f32 to vector<1x4xf32>
    %204 = arith.mulf %202, %203 : vector<1x4xf32>
    %205 = arith.addf %197, %204 : vector<1x4xf32>
    %c0_83 = arith.constant 0 : index
    %c0_84 = arith.constant 0 : index
    %206 = vector.load %arg17[%c0_83, %c0_84] : memref<1x4xf32, #tpu.memory_space<vmem>>, vector<1x4xf32>
    tpu.vector_store %arg17[%c0_83, %c0_84], %205 {strides = array<i32>} : memref<1x4xf32, #tpu.memory_space<vmem>>, vector<1x4xf32>,
    return
  }
}

</mosaic_0001>

<llo_original>
// kernel: dense_lm_model_forward.1
$region0: #{dense_lm_model_forward.1}
  #allocation0 [shape = 'u32[]', space=smem, size = 0x4, offset = 0x4, fixed_abs, tag = 'smem constant byte address 0x4 - core index']
  #allocation1 [shape = 'u32[144,128]{1,0:T(1,128)}', space=vmem, size = 0x12000, scoped, tag = 'internal scratch']
  %s0 = inlined_call_operand.vmem [shape: s32[96,1], index: 0, kind: input, shape index: {}]
  %s1 = inlined_call_operand.vmem [shape: s32[12,1], index: 1, kind: input, shape index: {}]
  %s2 = inlined_call_operand.vmem [shape: s32[96,1], index: 2, kind: input, shape index: {}]
  %s3 = inlined_call_operand.vmem [shape: bf16[256,128], index: 3, kind: input, shape index: {}]
  %s4 = inlined_call_operand.vmem [shape: bf16[128,128], index: 4, kind: input, shape index: {}]
  %s5 = inlined_call_operand.vmem [shape: f32[1,128], index: 5, kind: input, shape index: {}]
  %s6 = inlined_call_operand.vmem [shape: bf16[128,128], index: 6, kind: input, shape index: {}]
  %s7 = inlined_call_operand.vmem [shape: f32[1,128], index: 7, kind: input, shape index: {}]
  %s8 = inlined_call_operand.vmem [shape: bf16[128,128], index: 8, kind: input, shape index: {}]
  %s9 = inlined_call_operand.vmem [shape: f32[1,128], index: 9, kind: input, shape index: {}]
  %s10 = inlined_call_operand.vmem [shape: bf16[128,128], index: 10, kind: input, shape index: {}]
  %s11 = inlined_call_operand.vmem [shape: f32[1,128], index: 11, kind: input, shape index: {}]
  %s12 = inlined_call_operand.vmem [shape: f32[1,128], index: 12, kind: input, shape index: {}]
  %s13 = inlined_call_operand.vmem [shape: f32[1,128], index: 13, kind: input, shape index: {}]
  %s14 = inlined_call_operand.vmem [shape: bf16[128,256], index: 14, kind: input, shape index: {}]
  %s15 = inlined_call_operand.vmem [shape: f32[1,256], index: 15, kind: input, shape index: {}]
  %s16 = inlined_call_operand.vmem [shape: f32[12,12], index: 16, kind: output, shape index: {0}]
  %s17 = inlined_call_operand.vmem [shape: f32[1,4], index: 17, kind: output, shape index: {1}]
  %s18 = inlined_call_operand.vmem [shape: f32[12,128], index: 18, kind: output, shape index: {2}]
  %19 = xla_tuple %s16, %s17, %s18
  %s20 = sld [smem:[#allocation0]]
  $region90: #{dense_lm_model_forward.1} parent=0
    _
  %s22 = ssub.s32 1, %s20
  %s23 = scalar_select 0, %s22, %s20
  // Predicated region
  $region2: #{dense_lm_model_forward.1} parent=0 // pred_check
    _
  $region3: #{dense_lm_model_forward.1} parent=0 // pred_check_branch
    %25 = sbr.rel (0) target = $region5
  $region4: #{dense_lm_model_forward.1} parent=0 // pred_region
    _
  $region5: #{dense_lm_model_forward.1} parent=0 // pred_fallthru
    _
  // Predicated region
  $region6: #{dense_lm_model_forward.1} parent=0 // pred_check
    _
  $region7: #{dense_lm_model_forward.1} parent=0 // pred_check_branch
    %27 = sbr.rel (0) target = $region9
  $region8: #{dense_lm_model_forward.1} parent=0 // pred_region
    _
  $region9: #{dense_lm_model_forward.1} parent=0 // pred_fallthru
    _
  // Predicated region
  $region10: #{dense_lm_model_forward.1} parent=0 // pred_check
    _
  $region11: #{dense_lm_model_forward.1} parent=0 // pred_check_branch
    %29 = sbr.rel (0) target = $region13
  $region12: #{dense_lm_model_forward.1} parent=0 // pred_region
    _
  $region13: #{dense_lm_model_forward.1} parent=0 // pred_fallthru
    _
  // Predicated region
  $region14: #{dense_lm_model_forward.1} parent=0 // pred_check
    _
  $region15: #{dense_lm_model_forward.1} parent=0 // pred_check_branch
    %31 = sbr.rel (0) target = $region17
  $region16: #{dense_lm_model_forward.1} parent=0 // pred_region
    _
  $region17: #{dense_lm_model_forward.1} parent=0 // pred_fallthru
    _
  // Predicated region
  $region18: #{dense_lm_model_forward.1} parent=0 // pred_check
    _
  $region19: #{dense_lm_model_forward.1} parent=0 // pred_check_branch
    %33 = sbr.rel (0) target = $region21
  $region20: #{dense_lm_model_forward.1} parent=0 // pred_region
    _
  $region21: #{dense_lm_model_forward.1} parent=0 // pred_fallthru
    _
  // Predicated region
  $region22: #{dense_lm_model_forward.1} parent=0 // pred_check
    _
  $region23: #{dense_lm_model_forward.1} parent=0 // pred_check_branch
    %35 = sbr.rel (0) target = $region25
  $region24: #{dense_lm_model_forward.1} parent=0 // pred_region
    _
  $region25: #{dense_lm_model_forward.1} parent=0 // pred_fallthru
    _
  // Predicated region
  $region26: #{dense_lm_model_forward.1} parent=0 // pred_check
    _
  $region27: #{dense_lm_model_forward.1} parent=0 // pred_check_branch
    %37 = sbr.rel (0) target = $region29
  $region28: #{dense_lm_model_forward.1} parent=0 // pred_region
    _
  $region29: #{dense_lm_model_forward.1} parent=0 // pred_fallthru
    _
  // Predicated region
  $region30: #{dense_lm_model_forward.1} parent=0 // pred_check
    _
  $region31: #{dense_lm_model_forward.1} parent=0 // pred_check_branch
    %39 = sbr.rel (0) target = $region33
  $region32: #{dense_lm_model_forward.1} parent=0 // pred_region
    _
  $region33: #{dense_lm_model_forward.1} parent=0 // pred_fallthru
    _
  // Predicated region
  $region34: #{dense_lm_model_forward.1} parent=0 // pred_check
    _
  $region35: #{dense_lm_model_forward.1} parent=0 // pred_check_branch
    %41 = sbr.rel (0) target = $region37
  $region36: #{dense_lm_model_forward.1} parent=0 // pred_region
    _
  $region37: #{dense_lm_model_forward.1} parent=0 // pred_fallthru
    _
  // Predicated region
  $region38: #{dense_lm_model_forward.1} parent=0 // pred_check
    _
  $region39: #{dense_lm_model_forward.1} parent=0 // pred_check_branch
    %43 = sbr.rel (0) target = $region41
  $region40: #{dense_lm_model_forward.1} parent=0 // pred_region
    _
  $region41: #{dense_lm_model_forward.1} parent=0 // pred_fallthru
    _
  // Predicated region
  $region42: #{dense_lm_model_forward.1} parent=0 // pred_check
    _
  $region43: #{dense_lm_model_forward.1} parent=0 // pred_check_branch
    %45 = sbr.rel (0) target = $region45
  $region44: #{dense_lm_model_forward.1} parent=0 // pred_region
    _
  $region45: #{dense_lm_model_forward.1} parent=0 // pred_fallthru
    _
  // Predicated region
  $region46: #{dense_lm_model_forward.1} parent=0 // pred_check
    _
  $region47: #{dense_lm_model_forward.1} parent=0 // pred_check_branch
    %47 = sbr.rel (0) target = $region49
  $region48: #{dense_lm_model_forward.1} parent=0 // pred_region
    _
  $region49: #{dense_lm_model_forward.1} parent=0 // pred_fallthru
    _
  // Predicated region
  $region50: #{dense_lm_model_forward.1} parent=0 // pred_check
    _
  $region51: #{dense_lm_model_forward.1} parent=0 // pred_check_branch
    %49 = sbr.rel (0) target = $region53
  $region52: #{dense_lm_model_forward.1} parent=0 // pred_region
    _
  $region53: #{dense_lm_model_forward.1} parent=0 // pred_fallthru
    _
  // Predicated region
  $region54: #{dense_lm_model_forward.1} parent=0 // pred_check
    _
  $region55: #{dense_lm_model_forward.1} parent=0 // pred_check_branch
    %51 = sbr.rel (0) target = $region57
  $region56: #{dense_lm_model_forward.1} parent=0 // pred_region
    _
  $region57: #{dense_lm_model_forward.1} parent=0 // pred_fallthru
    _
  // Predicated region
  $region58: #{dense_lm_model_forward.1} parent=0 // pred_check
    _
  $region59: #{dense_lm_model_forward.1} parent=0 // pred_check_branch
    %53 = sbr.rel (0) target = $region61
  $region60: #{dense_lm_model_forward.1} parent=0 // pred_region
    _
  $region61: #{dense_lm_model_forward.1} parent=0 // pred_fallthru
    _
  // Predicated region
  $region62: #{dense_lm_model_forward.1} parent=0 // pred_check
    _
  $region63: #{dense_lm_model_forward.1} parent=0 // pred_check_branch
    %55 = sbr.rel (0) target = $region65
  $region64: #{dense_lm_model_forward.1} parent=0 // pred_region
    _
  $region65: #{dense_lm_model_forward.1} parent=0 // pred_fallthru
    _
  %v57 = vld [vmem:[%s0] sm:$0xff]
  %v58 = vld [vmem:[%s0 + $0x8] sm:$0xff]
  %v59 = vld [vmem:[%s0 + $0x10] sm:$0xff]
  %v60 = vld [vmem:[%s0 + $0x18] sm:$0xff]
  %v61 = vld [vmem:[%s0 + $0x20] sm:$0xff]
  %v62 = vld [vmem:[%s0 + $0x28] sm:$0xff]
  %v63 = vld [vmem:[%s0 + $0x30] sm:$0xff]
  %v64 = vld [vmem:[%s0 + $0x38] sm:$0xff]
  %v65 = vld [vmem:[%s0 + $0x40] sm:$0xff]
  %v66 = vld [vmem:[%s0 + $0x48] sm:$0xff]
  %v67 = vld [vmem:[%s0 + $0x50] sm:$0xff]
  %v68 = vld [vmem:[%s0 + $0x58] sm:$0xff]
  %v69 = vlaneseq
  %v70 = vand.u32 %v69, 127
  %v71 = vadd.s32 %v70, 128
  %72 = vset.pattern.permute.xlu0 0
  %73 = vperm.xlu0 %72, %v57
  %v74 = vpop.permute.xlu0 %73
  %75 = vset.pattern.permute.xlu0 0
  %76 = vperm.xlu0 %75, %v58
  %v77 = vpop.permute.xlu0 %76
  %78 = vset.pattern.permute.xlu0 0
  %79 = vperm.xlu0 %78, %v59
  %v80 = vpop.permute.xlu0 %79
  %81 = vset.pattern.permute.xlu0 0
  %82 = vperm.xlu0 %81, %v60
  %v83 = vpop.permute.xlu0 %82
  %84 = vset.pattern.permute.xlu0 0
  %85 = vperm.xlu0 %84, %v61
  %v86 = vpop.permute.xlu0 %85
  %87 = vset.pattern.permute.xlu0 0
  %88 = vperm.xlu0 %87, %v62
  %v89 = vpop.permute.xlu0 %88
  %90 = vset.pattern.permute.xlu0 0
  %91 = vperm.xlu0 %90, %v63
  %v92 = vpop.permute.xlu0 %91
  %93 = vset.pattern.permute.xlu0 0
  %94 = vperm.xlu0 %93, %v64
  %v95 = vpop.permute.xlu0 %94
  %96 = vset.pattern.permute.xlu0 0
  %97 = vperm.xlu0 %96, %v65
  %v98 = vpop.permute.xlu0 %97
  %99 = vset.pattern.permute.xlu0 0
  %100 = vperm.xlu0 %99, %v66
  %v101 = vpop.permute.xlu0 %100
  %102 = vset.pattern.permute.xlu0 0
  %103 = vperm.xlu0 %102, %v67
  %v104 = vpop.permute.xlu0 %103
  %105 = vset.pattern.permute.xlu0 0
  %106 = vperm.xlu0 %105, %v68
  %v107 = vpop.permute.xlu0 %106
  %vm108 = vcmp.eq.s32.totalorder %v70, %v74
  %vm109 = vcmp.eq.s32.totalorder %v71, %v74
  %vm110 = vcmp.eq.s32.totalorder %v70, %v77
  %vm111 = vcmp.eq.s32.totalorder %v71, %v77
  %vm112 = vcmp.eq.s32.totalorder %v70, %v80
  %vm113 = vcmp.eq.s32.totalorder %v71, %v80
  %vm114 = vcmp.eq.s32.totalorder %v70, %v83
  %vm115 = vcmp.eq.s32.totalorder %v71, %v83
  %vm116 = vcmp.eq.s32.totalorder %v70, %v86
  %vm117 = vcmp.eq.s32.totalorder %v71, %v86
  %vm118 = vcmp.eq.s32.totalorder %v70, %v89
  %vm119 = vcmp.eq.s32.totalorder %v71, %v89
  %vm120 = vcmp.eq.s32.totalorder %v70, %v92
  %vm121 = vcmp.eq.s32.totalorder %v71, %v92
  %vm122 = vcmp.eq.s32.totalorder %v70, %v95
  %vm123 = vcmp.eq.s32.totalorder %v71, %v95
  %vm124 = vcmp.eq.s32.totalorder %v70, %v98
  %vm125 = vcmp.eq.s32.totalorder %v71, %v98
  %vm126 = vcmp.eq.s32.totalorder %v70, %v101
  %vm127 = vcmp.eq.s32.totalorder %v71, %v101
  %vm128 = vcmp.eq.s32.totalorder %v70, %v104
  %vm129 = vcmp.eq.s32.totalorder %v71, %v104
  %vm130 = vcmp.eq.s32.totalorder %v70, %v107
  %vm131 = vcmp.eq.s32.totalorder %v71, %v107
  %v132 = vsel %vm108, 1.0, 0.0
  %v133 = vsel %vm109, 1.0, 0.0
  %v134 = vsel %vm110, 1.0, 0.0
  %v135 = vsel %vm111, 1.0, 0.0
  %v136 = vsel %vm112, 1.0, 0.0
  %v137 = vsel %vm113, 1.0, 0.0
  %v138 = vsel %vm114, 1.0, 0.0
  %v139 = vsel %vm115, 1.0, 0.0
  %v140 = vsel %vm116, 1.0, 0.0
  %v141 = vsel %vm117, 1.0, 0.0
  %v142 = vsel %vm118, 1.0, 0.0
  %v143 = vsel %vm119, 1.0, 0.0
  %v144 = vsel %vm120, 1.0, 0.0
  %v145 = vsel %vm121, 1.0, 0.0
  %v146 = vsel %vm122, 1.0, 0.0
  %v147 = vsel %vm123, 1.0, 0.0
  %v148 = vsel %vm124, 1.0, 0.0
  %v149 = vsel %vm125, 1.0, 0.0
  %v150 = vsel %vm126, 1.0, 0.0
  %v151 = vsel %vm127, 1.0, 0.0
  %v152 = vsel %vm128, 1.0, 0.0
  %v153 = vsel %vm129, 1.0, 0.0
  %v154 = vsel %vm130, 1.0, 0.0
  %v155 = vsel %vm131, 1.0, 0.0
  %v156 = vpack.c.bf16 %v134, %v132
  %v157 = vpack.c.bf16 %v135, %v133
  %v158 = vpack.c.bf16 %v138, %v136
  %v159 = vpack.c.bf16 %v139, %v137
  %v160 = vpack.c.bf16 %v142, %v140
  %v161 = vpack.c.bf16 %v143, %v141
  %v162 = vpack.c.bf16 %v146, %v144
  %v163 = vpack.c.bf16 %v147, %v145
  %v164 = vpack.c.bf16 %v150, %v148
  %v165 = vpack.c.bf16 %v151, %v149
  %v166 = vpack.c.bf16 %v154, %v152
  %v167 = vpack.c.bf16 %v155, %v153
  %v168 = vld [vmem:[%s3] sm:$0xf]
  %v169 = vld [vmem:[%s3 + $0x4] sm:$0xf]
  %v170 = vld [vmem:[%s3 + $0x8] sm:$0xf]
  %v171 = vld [vmem:[%s3 + $0xc] sm:$0xf]
  %v172 = vld [vmem:[%s3 + $0x10] sm:$0xf]
  %v173 = vld [vmem:[%s3 + $0x14] sm:$0xf]
  %v174 = vld [vmem:[%s3 + $0x18] sm:$0xf]
  %v175 = vld [vmem:[%s3 + $0x1c] sm:$0xf]
  %v176 = vld [vmem:[%s3 + $0x20] sm:$0xf]
  %v177 = vld [vmem:[%s3 + $0x24] sm:$0xf]
  %v178 = vld [vmem:[%s3 + $0x28] sm:$0xf]
  %v179 = vld [vmem:[%s3 + $0x2c] sm:$0xf]
  %v180 = vld [vmem:[%s3 + $0x30] sm:$0xf]
  %v181 = vld [vmem:[%s3 + $0x34] sm:$0xf]
  %v182 = vld [vmem:[%s3 + $0x38] sm:$0xf]
  %v183 = vld [vmem:[%s3 + $0x3c] sm:$0xf]
  %v184 = vld [vmem:[%s3 + $0x40] sm:$0xf]
  %v185 = vld [vmem:[%s3 + $0x44] sm:$0xf]
  %v186 = vld [vmem:[%s3 + $0x48] sm:$0xf]
  %v187 = vld [vmem:[%s3 + $0x4c] sm:$0xf]
  %v188 = vld [vmem:[%s3 + $0x50] sm:$0xf]
  %v189 = vld [vmem:[%s3 + $0x54] sm:$0xf]
  %v190 = vld [vmem:[%s3 + $0x58] sm:$0xf]
  %v191 = vld [vmem:[%s3 + $0x5c] sm:$0xf]
  %v192 = vld [vmem:[%s3 + $0x60] sm:$0xf]
  %v193 = vld [vmem:[%s3 + $0x64] sm:$0xf]
  %v194 = vld [vmem:[%s3 + $0x68] sm:$0xf]
  %v195 = vld [vmem:[%s3 + $0x6c] sm:$0xf]
  %v196 = vld [vmem:[%s3 + $0x70] sm:$0xf]
  %v197 = vld [vmem:[%s3 + $0x74] sm:$0xf]
  %v198 = vld [vmem:[%s3 + $0x78] sm:$0xf]
  %v199 = vld [vmem:[%s3 + $0x7c] sm:$0xf]
  %v232 = vunpack.c.l.b16 %v168
  %v233 = vunpack.c.l.b16 %v169
  %v234 = vunpack.c.l.b16 %v170
  %v235 = vunpack.c.l.b16 %v171
  %v236 = vunpack.c.l.b16 %v172
  %v237 = vunpack.c.l.b16 %v173
  %v238 = vunpack.c.l.b16 %v174
  %v239 = vunpack.c.l.b16 %v175
  %v240 = vunpack.c.l.b16 %v176
  %v241 = vunpack.c.l.b16 %v177
  %v242 = vunpack.c.l.b16 %v178
  %v243 = vunpack.c.l.b16 %v179
  %v244 = vunpack.c.l.b16 %v180
  %v245 = vunpack.c.l.b16 %v181
  %v246 = vunpack.c.l.b16 %v182
  %v247 = vunpack.c.l.b16 %v183
  %v248 = vunpack.c.l.b16 %v184
  %v249 = vunpack.c.l.b16 %v185
  %v250 = vunpack.c.l.b16 %v186
  %v251 = vunpack.c.l.b16 %v187
  %v252 = vunpack.c.l.b16 %v188
  %v253 = vunpack.c.l.b16 %v189
  %v254 = vunpack.c.l.b16 %v190
  %v255 = vunpack.c.l.b16 %v191
  %v256 = vunpack.c.l.b16 %v192
  %v257 = vunpack.c.l.b16 %v193
  %v258 = vunpack.c.l.b16 %v194
  %v259 = vunpack.c.l.b16 %v195
  %v260 = vunpack.c.l.b16 %v196
  %v261 = vunpack.c.l.b16 %v197
  %v262 = vunpack.c.l.b16 %v198
  %v263 = vunpack.c.l.b16 %v199
  %v264 = vpack.c.b16 %v233, %v232
  %v265 = vpack.c.b16 %v235, %v234
  %v266 = vpack.c.b16 %v237, %v236
  %v267 = vpack.c.b16 %v239, %v238
  %v268 = vpack.c.b16 %v241, %v240
  %v269 = vpack.c.b16 %v243, %v242
  %v270 = vpack.c.b16 %v245, %v244
  %v271 = vpack.c.b16 %v247, %v246
  %v272 = vpack.c.b16 %v249, %v248
  %v273 = vpack.c.b16 %v251, %v250
  %v274 = vpack.c.b16 %v253, %v252
  %v275 = vpack.c.b16 %v255, %v254
  %v276 = vpack.c.b16 %v257, %v256
  %v277 = vpack.c.b16 %v259, %v258
  %v278 = vpack.c.b16 %v261, %v260
  %v279 = vpack.c.b16 %v263, %v262
  %296 = vmatprep.subr.bf16.mxu0 0
  %297 = vmatpush1.bf16.msra.mxu0 %v264
  %298 = vmatprep.subr.bf16.mxu0 0
  %299 = vmatpush1.bf16.msra.mxu0 %v265
  %300 = vmatprep.subr.bf16.mxu0 0
  %301 = vmatpush1.bf16.msra.mxu0 %v266
  %302 = vmatprep.subr.bf16.mxu0 0
  %303 = vmatpush1.bf16.msra.mxu0 %v267
  %304 = vmatprep.subr.bf16.mxu0 0
  %305 = vmatpush1.bf16.msra.mxu0 %v268
  %306 = vmatprep.subr.bf16.mxu0 0
  %307 = vmatpush1.bf16.msra.mxu0 %v269
  %308 = vmatprep.subr.bf16.mxu0 0
  %309 = vmatpush1.bf16.msra.mxu0 %v270
  %310 = vmatprep.subr.bf16.mxu0 0
  %311 = vmatpush1.bf16.msra.mxu0 %v271
  %312 = vmatprep.subr.bf16.mxu0 0
  %313 = vmatpush1.bf16.msra.mxu0 %v272
  %314 = vmatprep.subr.bf16.mxu0 0
  %315 = vmatpush1.bf16.msra.mxu0 %v273
  %316 = vmatprep.subr.bf16.mxu0 0
  %317 = vmatpush1.bf16.msra.mxu0 %v274
  %318 = vmatprep.subr.bf16.mxu0 0
  %319 = vmatpush1.bf16.msra.mxu0 %v275
  %320 = vmatprep.subr.bf16.mxu0 0
  %321 = vmatpush1.bf16.msra.mxu0 %v276
  %322 = vmatprep.subr.bf16.mxu0 0
  %323 = vmatpush1.bf16.msra.mxu0 %v277
  %324 = vmatprep.subr.bf16.mxu0 0
  %325 = vmatpush1.bf16.msra.mxu0 %v278
  %326 = vmatprep.subr.bf16.mxu0 0
  %327 = vmatpush1.bf16.msra.mxu0 %v279
  %328 = vmatprep.mubr.bf16.mxu0 %v157
  %329 = vmatmul.mubr.bf16.gmra.mrb[0].mxu0 %v156
  %v330 = vpop.f32.mrb[0].mxu0
  %v331 = vadd.f32 0.0, %v330
  %v332 = vpop.f32.mrb[0].mxu0
  %v333 = vpop.f32.mrb[0].mxu0
  %v334 = vadd.f32 0.0, %v333
  %v335 = vpop.f32.mrb[0].mxu0
  %336 = vmatprep.mubr.bf16.mxu0 %v159
  %337 = vmatmul.mubr.bf16.gmra.mrb[0].mxu0 %v158
  %v338 = vpop.f32.mrb[0].mxu0
  %v339 = vadd.f32 0.0, %v338
  %v340 = vpop.f32.mrb[0].mxu0
  %v341 = vpop.f32.mrb[0].mxu0
  %v342 = vadd.f32 0.0, %v341
  %v343 = vpop.f32.mrb[0].mxu0
  %344 = vmatprep.mubr.bf16.mxu0 %v161
  %345 = vmatmul.mubr.bf16.gmra.mrb[0].mxu0 %v160
  %v346 = vpop.f32.mrb[0].mxu0
  %v347 = vadd.f32 0.0, %v346
  %v348 = vpop.f32.mrb[0].mxu0
  %v349 = vpop.f32.mrb[0].mxu0
  %v350 = vadd.f32 0.0, %v349
  %v351 = vpop.f32.mrb[0].mxu0
  %352 = vmatprep.mubr.bf16.mxu0 %v163
  %353 = vmatmul.mubr.bf16.gmra.mrb[0].mxu0 %v162
  %v354 = vpop.f32.mrb[0].mxu0
  %v355 = vadd.f32 0.0, %v354
  %v356 = vpop.f32.mrb[0].mxu0
  %v357 = vpop.f32.mrb[0].mxu0
  %v358 = vadd.f32 0.0, %v357
  %v359 = vpop.f32.mrb[0].mxu0
  %360 = vmatprep.mubr.bf16.mxu0 %v165
  %361 = vmatmul.mubr.bf16.gmra.mrb[0].mxu0 %v164
  %v362 = vpop.f32.mrb[0].mxu0
  %v363 = vadd.f32 0.0, %v362
  %v364 = vpop.f32.mrb[0].mxu0
  %v365 = vpop.f32.mrb[0].mxu0
  %v366 = vadd.f32 0.0, %v365
  %v367 = vpop.f32.mrb[0].mxu0
  %368 = vmatprep.mubr.bf16.mxu0 %v167
  %369 = vmatmul.mubr.bf16.gmra.mrb[0].mxu0 %v166
  %v370 = vpop.f32.mrb[0].mxu0
  %v371 = vadd.f32 0.0, %v370
  %v372 = vpop.f32.mrb[0].mxu0
  %v373 = vpop.f32.mrb[0].mxu0
  %v374 = vadd.f32 0.0, %v373
  %v375 = vpop.f32.mrb[0].mxu0
  %376 = vdwg.mxu0
  %v377 = vpack.c.bf16 %v334, %v331
  %v378 = vpack.c.bf16 %v342, %v339
  %v379 = vpack.c.bf16 %v350, %v347
  %v380 = vpack.c.bf16 %v358, %v355
  %v381 = vpack.c.bf16 %v366, %v363
  %v382 = vpack.c.bf16 %v374, %v371
  %v383 = vld [vmem:[%s4] sm:$0xf]
  %v384 = vld [vmem:[%s4 + $0x4] sm:$0xf]
  %v385 = vld [vmem:[%s4 + $0x8] sm:$0xf]
  %v386 = vld [vmem:[%s4 + $0xc] sm:$0xf]
  %v387 = vld [vmem:[%s4 + $0x10] sm:$0xf]
  %v388 = vld [vmem:[%s4 + $0x14] sm:$0xf]
  %v389 = vld [vmem:[%s4 + $0x18] sm:$0xf]
  %v390 = vld [vmem:[%s4 + $0x1c] sm:$0xf]
  %v391 = vld [vmem:[%s4 + $0x20] sm:$0xf]
  %v392 = vld [vmem:[%s4 + $0x24] sm:$0xf]
  %v393 = vld [vmem:[%s4 + $0x28] sm:$0xf]
  %v394 = vld [vmem:[%s4 + $0x2c] sm:$0xf]
  %v395 = vld [vmem:[%s4 + $0x30] sm:$0xf]
  %v396 = vld [vmem:[%s4 + $0x34] sm:$0xf]
  %v397 = vld [vmem:[%s4 + $0x38] sm:$0xf]
  %v398 = vld [vmem:[%s4 + $0x3c] sm:$0xf]
  %v399 = vld [vmem:[%s5] sm:$0x1]
  %v401 = vlaneseq
  %v402 = vshrl.u32 %v401, 7
  %v403 = vsub.s32 0, %v402
  %v404 = vrot.slane %v399, %v403
  %v422 = vunpack.c.l.b16 %v383
  %v423 = vunpack.c.l.b16 %v384
  %v424 = vunpack.c.l.b16 %v385
  %v425 = vunpack.c.l.b16 %v386
  %v426 = vunpack.c.l.b16 %v387
  %v427 = vunpack.c.l.b16 %v388
  %v428 = vunpack.c.l.b16 %v389
  %v429 = vunpack.c.l.b16 %v390
  %v430 = vunpack.c.l.b16 %v391
  %v431 = vunpack.c.l.b16 %v392
  %v432 = vunpack.c.l.b16 %v393
  %v433 = vunpack.c.l.b16 %v394
  %v434 = vunpack.c.l.b16 %v395
  %v435 = vunpack.c.l.b16 %v396
  %v436 = vunpack.c.l.b16 %v397
  %v437 = vunpack.c.l.b16 %v398
  %v438 = vpack.c.b16 %v423, %v422
  %v439 = vpack.c.b16 %v425, %v424
  %v440 = vpack.c.b16 %v427, %v426
  %v441 = vpack.c.b16 %v429, %v428
  %v442 = vpack.c.b16 %v431, %v430
  %v443 = vpack.c.b16 %v433, %v432
  %v444 = vpack.c.b16 %v435, %v434
  %v445 = vpack.c.b16 %v437, %v436
  %454 = vmatprep.subr.bf16.mxu0 0
  %455 = vmatpush1.bf16.msra.mxu0 %v438
  %456 = vmatprep.subr.bf16.mxu0 0
  %457 = vmatpush1.bf16.msra.mxu0 %v439
  %458 = vmatprep.subr.bf16.mxu0 0
  %459 = vmatpush1.bf16.msra.mxu0 %v440
  %460 = vmatprep.subr.bf16.mxu0 0
  %461 = vmatpush1.bf16.msra.mxu0 %v441
  %462 = vmatprep.subr.bf16.mxu0 0
  %463 = vmatpush1.bf16.msra.mxu0 %v442
  %464 = vmatprep.subr.bf16.mxu0 0
  %465 = vmatpush1.bf16.msra.mxu0 %v443
  %466 = vmatprep.subr.bf16.mxu0 0
  %467 = vmatpush1.bf16.msra.mxu0 %v444
  %468 = vmatprep.subr.bf16.mxu0 0
  %469 = vmatpush1.bf16.msra.mxu0 %v445
  %470 = vmatprep.subr.bf16.mxu0 0
  %471 = vmatpush1.bf16.msra.mxu0 0
  %472 = vmatprep.subr.bf16.mxu0 0
  %473 = vmatpush1.bf16.msra.mxu0 0
  %474 = vmatprep.subr.bf16.mxu0 0
  %475 = vmatpush1.bf16.msra.mxu0 0
  %476 = vmatprep.subr.bf16.mxu0 0
  %477 = vmatpush1.bf16.msra.mxu0 0
  %478 = vmatprep.subr.bf16.mxu0 0
  %479 = vmatpush1.bf16.msra.mxu0 0
  %480 = vmatprep.subr.bf16.mxu0 0
  %481 = vmatpush1.bf16.msra.mxu0 0
  %482 = vmatprep.subr.bf16.mxu0 0
  %483 = vmatpush1.bf16.msra.mxu0 0
  %484 = vmatprep.subr.bf16.mxu0 0
  %485 = vmatpush1.bf16.msra.mxu0 0
  %486 = vmatprep.mubr.bf16.mxu0 0
  %487 = vmatmul.mubr.bf16.gmra.mrb[0].mxu0 %v377
  %v488 = vpop.f32.mrb[0].mxu0
  %v489 = vadd.f32 %v404, %v488
  %v490 = vpop.f32.mrb[0].mxu0
  %v491 = vpop.f32.mrb[0].mxu0
  %v492 = vadd.f32 %v404, %v491
  %v493 = vpop.f32.mrb[0].mxu0
  %494 = vmatprep.mubr.bf16.mxu0 0
  %495 = vmatmul.mubr.bf16.gmra.mrb[0].mxu0 %v378
  %v496 = vpop.f32.mrb[0].mxu0
  %v497 = vadd.f32 %v404, %v496
  %v498 = vpop.f32.mrb[0].mxu0
  %v499 = vpop.f32.mrb[0].mxu0
  %v500 = vadd.f32 %v404, %v499
  %v501 = vpop.f32.mrb[0].mxu0
  %502 = vmatprep.mubr.bf16.mxu0 0
  %503 = vmatmul.mubr.bf16.gmra.mrb[0].mxu0 %v379
  %v504 = vpop.f32.mrb[0].mxu0
  %v505 = vadd.f32 %v404, %v504
  %v506 = vpop.f32.mrb[0].mxu0
  %v507 = vpop.f32.mrb[0].mxu0
  %v508 = vadd.f32 %v404, %v507
  %v509 = vpop.f32.mrb[0].mxu0
  %510 = vmatprep.mubr.bf16.mxu0 0
  %511 = vmatmul.mubr.bf16.gmra.mrb[0].mxu0 %v380
  %v512 = vpop.f32.mrb[0].mxu0
  %v513 = vadd.f32 %v404, %v512
  %v514 = vpop.f32.mrb[0].mxu0
  %v515 = vpop.f32.mrb[0].mxu0
  %v516 = vadd.f32 %v404, %v515
  %v517 = vpop.f32.mrb[0].mxu0
  %518 = vmatprep.mubr.bf16.mxu0 0
  %519 = vmatmul.mubr.bf16.gmra.mrb[0].mxu0 %v381
  %v520 = vpop.f32.mrb[0].mxu0
  %v521 = vadd.f32 %v404, %v520
  %v522 = vpop.f32.mrb[0].mxu0
  %v523 = vpop.f32.mrb[0].mxu0
  %v524 = vadd.f32 %v404, %v523
  %v525 = vpop.f32.mrb[0].mxu0
  %526 = vmatprep.mubr.bf16.mxu0 0
  %527 = vmatmul.mubr.bf16.gmra.mrb[0].mxu0 %v382
  %v528 = vpop.f32.mrb[0].mxu0
  %v529 = vadd.f32 %v404, %v528
  %v530 = vpop.f32.mrb[0].mxu0
  %v531 = vpop.f32.mrb[0].mxu0
  %v532 = vadd.f32 %v404, %v531
  %v533 = vpop.f32.mrb[0].mxu0
  %534 = vdwg.mxu0
  %v535 = vtanh.pop %v489
  %v536 = vtanh.pop %v492
  %v537 = vtanh.pop %v497
  %v538 = vtanh.pop %v500
  %v539 = vtanh.pop %v505
  %v540 = vtanh.pop %v508
  %v541 = vtanh.pop %v513
  %v542 = vtanh.pop %v516
  %v543 = vtanh.pop %v521
  %v544 = vtanh.pop %v524
  %v545 = vtanh.pop %v529
  %v546 = vtanh.pop %v532
  %v547 = vlaneseq
  %v548 = vshrl.u32 %v547, 7
  %v549 = vadd.s32 %v548, 8
  %v550 = vmul.u32 %v548, 8
  %v551 = vmul.u32 %v549, 8
  %vm552 = vcmp.eq.s32.totalorder %v70, %v550
  %vm553 = vcmp.eq.s32.totalorder %v70, %v551
  %v554 = vsel %vm552, 1.0, 0.0
  %v555 = vsel %vm553, 1.0, 0.0
  %vm556 = vcmask 785408
  %v558 = vsel %vm556, %v554, 0
  %v561 = vsel %vm556, %v555, 0
  %563 = vmatprep.subr.mxu0 0.0
  %564 = vmatpush1.msra.mxu0 %v535
  %565 = vmatprep.subr.mxu0 0.0
  %566 = vmatpush1.msra.mxu0 %v536
  %567 = vmatprep.subr.mxu0 0.0
  %568 = vmatpush1.msra.mxu0 %v537
  %569 = vmatprep.subr.mxu0 0.0
  %570 = vmatpush1.msra.mxu0 %v538
  %571 = vmatprep.subr.mxu0 0.0
  %572 = vmatpush1.msra.mxu0 %v539
  %573 = vmatprep.subr.mxu0 0.0
  %574 = vmatpush1.msra.mxu0 %v540
  %575 = vmatprep.subr.mxu0 0.0
  %576 = vmatpush1.msra.mxu0 %v541
  %577 = vmatprep.subr.mxu0 0.0
  %578 = vmatpush1.msra.mxu0 %v542
  %579 = vmatprep.subr.mxu0 0.0
  %580 = vmatpush1.msra.mxu0 %v543
  %581 = vmatprep.subr.mxu0 0.0
  %582 = vmatpush1.msra.mxu0 %v544
  %583 = vmatprep.subr.mxu0 0.0
  %584 = vmatpush1.msra.mxu0 %v545
  %585 = vmatprep.subr.mxu0 0.0
  %586 = vmatpush1.msra.mxu0 %v546
  %587 = vmatprep.subr.mxu0 0.0
  %588 = vmatpush1.msra.mxu0 0.0
  %589 = vmatprep.subr.mxu0 0.0
  %590 = vmatpush1.msra.mxu0 0.0
  %591 = vmatprep.subr.mxu0 0.0
  %592 = vmatpush1.msra.mxu0 0.0
  %593 = vmatprep.subr.mxu0 0.0
  %594 = vmatpush1.msra.mxu0 0.0
  %595 = vmatprep.subr.mxu0 0.0
  %596 = vmatpush1.msra.mxu0 0.0
  %597 = vmatprep.subr.mxu0 0.0
  %598 = vmatpush1.msra.mxu0 0.0
  %599 = vmatprep.subr.mxu0 0.0
  %600 = vmatpush1.msra.mxu0 0.0
  %601 = vmatprep.subr.mxu0 0.0
  %602 = vmatpush1.msra.mxu0 0.0
  %603 = vmatprep.subr.mxu0 0.0
  %604 = vmatpush1.msra.mxu0 0.0
  %605 = vmatprep.subr.mxu0 0.0
  %606 = vmatpush1.msra.mxu0 0.0
  %607 = vmatprep.subr.mxu0 0.0
  %608 = vmatpush1.msra.mxu0 0.0
  %609 = vmatprep.subr.mxu0 0.0
  %610 = vmatpush1.msra.mxu0 0.0
  %611 = vmatprep.subr.mxu0 0.0
  %612 = vmatpush1.msra.mxu0 0.0
  %613 = vmatprep.subr.mxu0 0.0
  %614 = vmatpush1.msra.mxu0 0.0
  %615 = vmatprep.subr.mxu0 0.0
  %616 = vmatpush1.msra.mxu0 0.0
  %617 = vmatprep.subr.mxu0 0.0
  %618 = vmatpush1.msra.mxu0 0.0
  %619 = vmatprep.subr.mxu0 0.0
  %620 = vmatpush1.msra.mxu0 0.0
  %621 = vmatprep.subr.mxu0 0.0
  %622 = vmatpush1.msra.mxu0 0.0
  %623 = vmatprep.subr.mxu0 0.0
  %624 = vmatpush1.msra.mxu0 0.0
  %625 = vmatprep.subr.mxu0 0.0
  %626 = vmatpush1.msra.mxu0 0.0
  %627 = vmatprep.mubr.f32.mxu0 0.0
  %628 = vmatmul.mubr.f32.gmra.mrb[0].mxu0 %v558
  %v629 = vpop.f32.mrb[0].mxu0
  %v630 = vadd.f32 0.0, %v629
  %v631 = vpop.f32.mrb[0].mxu0
  %632 = vmatprep.mubr.f32.mxu0 0.0
  %633 = vmatmul.mubr.f32.gmra.mrb[0].mxu0 %v561
  %v634 = vpop.f32.mrb[0].mxu0
  %v635 = vadd.f32 0.0, %v634
  %v636 = vpop.f32.mrb[0].mxu0
  %637 = vdwg.mxu0
  %v638 = vpack.c.bf16 %v635, %v630
  %v639 = vld [vmem:[%s6] sm:$0xf]
  %v640 = vld [vmem:[%s6 + $0x4] sm:$0xf]
  %v641 = vld [vmem:[%s6 + $0x8] sm:$0xf]
  %v642 = vld [vmem:[%s6 + $0xc] sm:$0xf]
  %v643 = vld [vmem:[%s6 + $0x10] sm:$0xf]
  %v644 = vld [vmem:[%s6 + $0x14] sm:$0xf]
  %v645 = vld [vmem:[%s6 + $0x18] sm:$0xf]
  %v646 = vld [vmem:[%s6 + $0x1c] sm:$0xf]
  %v647 = vld [vmem:[%s6 + $0x20] sm:$0xf]
  %v648 = vld [vmem:[%s6 + $0x24] sm:$0xf]
  %v649 = vld [vmem:[%s6 + $0x28] sm:$0xf]
  %v650 = vld [vmem:[%s6 + $0x2c] sm:$0xf]
  %v651 = vld [vmem:[%s6 + $0x30] sm:$0xf]
  %v652 = vld [vmem:[%s6 + $0x34] sm:$0xf]
  %v653 = vld [vmem:[%s6 + $0x38] sm:$0xf]
  %v654 = vld [vmem:[%s6 + $0x3c] sm:$0xf]
  %v655 = vld [vmem:[%s7] sm:$0x1]
  %v657 = vlaneseq
  %v658 = vshrl.u32 %v657, 7
  %v659 = vsub.s32 0, %v658
  %v660 = vrot.slane %v655, %v659
  %v678 = vunpack.c.l.b16 %v639
  %v679 = vunpack.c.l.b16 %v640
  %v680 = vunpack.c.l.b16 %v641
  %v681 = vunpack.c.l.b16 %v642
  %v682 = vunpack.c.l.b16 %v643
  %v683 = vunpack.c.l.b16 %v644
  %v684 = vunpack.c.l.b16 %v645
  %v685 = vunpack.c.l.b16 %v646
  %v686 = vunpack.c.l.b16 %v647
  %v687 = vunpack.c.l.b16 %v648
  %v688 = vunpack.c.l.b16 %v649
  %v689 = vunpack.c.l.b16 %v650
  %v690 = vunpack.c.l.b16 %v651
  %v691 = vunpack.c.l.b16 %v652
  %v692 = vunpack.c.l.b16 %v653
  %v693 = vunpack.c.l.b16 %v654
  %v694 = vpack.c.b16 %v679, %v678
  %v695 = vpack.c.b16 %v681, %v680
  %v696 = vpack.c.b16 %v683, %v682
  %v697 = vpack.c.b16 %v685, %v684
  %v698 = vpack.c.b16 %v687, %v686
  %v699 = vpack.c.b16 %v689, %v688
  %v700 = vpack.c.b16 %v691, %v690
  %v701 = vpack.c.b16 %v693, %v692
  %710 = vmatprep.subr.bf16.mxu0 0
  %711 = vmatpush1.bf16.msra.mxu0 %v694
  %712 = vmatprep.subr.bf16.mxu0 0
  %713 = vmatpush1.bf16.msra.mxu0 %v695
  %714 = vmatprep.subr.bf16.mxu0 0
  %715 = vmatpush1.bf16.msra.mxu0 %v696
  %716 = vmatprep.subr.bf16.mxu0 0
  %717 = vmatpush1.bf16.msra.mxu0 %v697
  %718 = vmatprep.subr.bf16.mxu0 0
  %719 = vmatpush1.bf16.msra.mxu0 %v698
  %720 = vmatprep.subr.bf16.mxu0 0
  %721 = vmatpush1.bf16.msra.mxu0 %v699
  %722 = vmatprep.subr.bf16.mxu0 0
  %723 = vmatpush1.bf16.msra.mxu0 %v700
  %724 = vmatprep.subr.bf16.mxu0 0
  %725 = vmatpush1.bf16.msra.mxu0 %v701
  %726 = vmatprep.subr.bf16.mxu0 0
  %727 = vmatpush1.bf16.msra.mxu0 0
  %728 = vmatprep.subr.bf16.mxu0 0
  %729 = vmatpush1.bf16.msra.mxu0 0
  %730 = vmatprep.subr.bf16.mxu0 0
  %731 = vmatpush1.bf16.msra.mxu0 0
  %732 = vmatprep.subr.bf16.mxu0 0
  %733 = vmatpush1.bf16.msra.mxu0 0
  %734 = vmatprep.subr.bf16.mxu0 0
  %735 = vmatpush1.bf16.msra.mxu0 0
  %736 = vmatprep.subr.bf16.mxu0 0
  %737 = vmatpush1.bf16.msra.mxu0 0
  %738 = vmatprep.subr.bf16.mxu0 0
  %739 = vmatpush1.bf16.msra.mxu0 0
  %740 = vmatprep.subr.bf16.mxu0 0
  %741 = vmatpush1.bf16.msra.mxu0 0
  %742 = vmatprep.mubr.bf16.mxu0 0
  %743 = vmatmul.mubr.bf16.gmra.mrb[0].mxu0 %v638
  %v744 = vpop.f32.mrb[0].mxu0
  %v745 = vadd.f32 %v660, %v744
  %v746 = vpop.f32.mrb[0].mxu0
  %v747 = vpop.f32.mrb[0].mxu0
  %v748 = vadd.f32 %v660, %v747
  %v749 = vpop.f32.mrb[0].mxu0
  %750 = vdwg.mxu0
  %v751 = vmax.f32 %v745, 0.0
  %v752 = vmax.f32 %v748, 0.0
  %v753 = vpack.c.bf16 %v752, %v751
  %v754 = vld [vmem:[%s8] sm:$0xf]
  %v755 = vld [vmem:[%s8 + $0x4] sm:$0xf]
  %v756 = vld [vmem:[%s8 + $0x8] sm:$0xf]
  %v757 = vld [vmem:[%s8 + $0xc] sm:$0xf]
  %v758 = vld [vmem:[%s8 + $0x10] sm:$0xf]
  %v759 = vld [vmem:[%s8 + $0x14] sm:$0xf]
  %v760 = vld [vmem:[%s8 + $0x18] sm:$0xf]
  %v761 = vld [vmem:[%s8 + $0x1c] sm:$0xf]
  %v762 = vld [vmem:[%s8 + $0x20] sm:$0xf]
  %v763 = vld [vmem:[%s8 + $0x24] sm:$0xf]
  %v764 = vld [vmem:[%s8 + $0x28] sm:$0xf]
  %v765 = vld [vmem:[%s8 + $0x2c] sm:$0xf]
  %v766 = vld [vmem:[%s8 + $0x30] sm:$0xf]
  %v767 = vld [vmem:[%s8 + $0x34] sm:$0xf]
  %v768 = vld [vmem:[%s8 + $0x38] sm:$0xf]
  %v769 = vld [vmem:[%s8 + $0x3c] sm:$0xf]
  %v770 = vld [vmem:[%s9] sm:$0x1]
  %v772 = vlaneseq
  %v773 = vshrl.u32 %v772, 7
  %v774 = vsub.s32 0, %v773
  %v775 = vrot.slane %v770, %v774
  %v793 = vunpack.c.l.b16 %v754
  %v794 = vunpack.c.l.b16 %v755
  %v795 = vunpack.c.l.b16 %v756
  %v796 = vunpack.c.l.b16 %v757
  %v797 = vunpack.c.l.b16 %v758
  %v798 = vunpack.c.l.b16 %v759
  %v799 = vunpack.c.l.b16 %v760
  %v800 = vunpack.c.l.b16 %v761
  %v801 = vunpack.c.l.b16 %v762
  %v802 = vunpack.c.l.b16 %v763
  %v803 = vunpack.c.l.b16 %v764
  %v804 = vunpack.c.l.b16 %v765
  %v805 = vunpack.c.l.b16 %v766
  %v806 = vunpack.c.l.b16 %v767
  %v807 = vunpack.c.l.b16 %v768
  %v808 = vunpack.c.l.b16 %v769
  %v809 = vpack.c.b16 %v794, %v793
  %v810 = vpack.c.b16 %v796, %v795
  %v811 = vpack.c.b16 %v798, %v797
  %v812 = vpack.c.b16 %v800, %v799
  %v813 = vpack.c.b16 %v802, %v801
  %v814 = vpack.c.b16 %v804, %v803
  %v815 = vpack.c.b16 %v806, %v805
  %v816 = vpack.c.b16 %v808, %v807
  %825 = vmatprep.subr.bf16.mxu0 0
  %826 = vmatpush1.bf16.msra.mxu0 %v809
  %827 = vmatprep.subr.bf16.mxu0 0
  %828 = vmatpush1.bf16.msra.mxu0 %v810
  %829 = vmatprep.subr.bf16.mxu0 0
  %830 = vmatpush1.bf16.msra.mxu0 %v811
  %831 = vmatprep.subr.bf16.mxu0 0
  %832 = vmatpush1.bf16.msra.mxu0 %v812
  %833 = vmatprep.subr.bf16.mxu0 0
  %834 = vmatpush1.bf16.msra.mxu0 %v813
  %835 = vmatprep.subr.bf16.mxu0 0
  %836 = vmatpush1.bf16.msra.mxu0 %v814
  %837 = vmatprep.subr.bf16.mxu0 0
  %838 = vmatpush1.bf16.msra.mxu0 %v815
  %839 = vmatprep.subr.bf16.mxu0 0
  %840 = vmatpush1.bf16.msra.mxu0 %v816
  %841 = vmatprep.subr.bf16.mxu0 0
  %842 = vmatpush1.bf16.msra.mxu0 0
  %843 = vmatprep.subr.bf16.mxu0 0
  %844 = vmatpush1.bf16.msra.mxu0 0
  %845 = vmatprep.subr.bf16.mxu0 0
  %846 = vmatpush1.bf16.msra.mxu0 0
  %847 = vmatprep.subr.bf16.mxu0 0
  %848 = vmatpush1.bf16.msra.mxu0 0
  %849 = vmatprep.subr.bf16.mxu0 0
  %850 = vmatpush1.bf16.msra.mxu0 0
  %851 = vmatprep.subr.bf16.mxu0 0
  %852 = vmatpush1.bf16.msra.mxu0 0
  %853 = vmatprep.subr.bf16.mxu0 0
  %854 = vmatpush1.bf16.msra.mxu0 0
  %855 = vmatprep.subr.bf16.mxu0 0
  %856 = vmatpush1.bf16.msra.mxu0 0
  %857 = vmatprep.mubr.bf16.mxu0 0
  %858 = vmatmul.mubr.bf16.gmra.mrb[0].mxu0 %v753
  %v859 = vpop.f32.mrb[0].mxu0
  %v860 = vadd.f32 %v775, %v859
  %v861 = vpop.f32.mrb[0].mxu0
  %v862 = vpop.f32.mrb[0].mxu0
  %v863 = vadd.f32 %v775, %v862
  %v864 = vpop.f32.mrb[0].mxu0
  %865 = vdwg.mxu0
  %866 = vst [vmem:[%s18] sm:$0xff] %v860
  %867 = vst [vmem:[%s18 + $0x8] sm:$0xf] %v863
  %868 = vmatprep.subr.mxu0 0.0
  %869 = vmatpush1.xpose.msra.mxu0 %v860
  %870 = vmatprep.subr.mxu0 0.0
  %871 = vmatpush1.xpose.msra.mxu0 %v863
  %872 = vmatprep.subr.mxu0 0.0
  %873 = vmatpush1.xpose.msra.mxu0 0.0
  %874 = vmatprep.subr.mxu0 0.0
  %875 = vmatpush1.xpose.msra.mxu0 0.0
  %876 = vmatprep.subr.mxu0 0.0
  %877 = vmatpush1.xpose.msra.mxu0 0.0
  %878 = vmatprep.subr.mxu0 0.0
  %879 = vmatpush1.xpose.msra.mxu0 0.0
  %880 = vmatprep.subr.mxu0 0.0
  %881 = vmatpush1.xpose.msra.mxu0 0.0
  %882 = vmatprep.subr.mxu0 0.0
  %883 = vmatpush1.xpose.msra.mxu0 0.0
  %884 = vmatprep.subr.mxu0 0.0
  %885 = vmatpush1.xpose.msra.mxu0 0.0
  %886 = vmatprep.subr.mxu0 0.0
  %887 = vmatpush1.xpose.msra.mxu0 0.0
  %888 = vmatprep.subr.mxu0 0.0
  %889 = vmatpush1.xpose.msra.mxu0 0.0
  %890 = vmatprep.subr.mxu0 0.0
  %891 = vmatpush1.xpose.msra.mxu0 0.0
  %892 = vmatprep.subr.mxu0 0.0
  %893 = vmatpush1.xpose.msra.mxu0 0.0
  %894 = vmatprep.subr.mxu0 0.0
  %895 = vmatpush1.xpose.msra.mxu0 0.0
  %896 = vmatprep.subr.mxu0 0.0
  %897 = vmatpush1.xpose.msra.mxu0 0.0
  %898 = vmatprep.subr.mxu0 0.0
  %899 = vmatpush1.xpose.msra.mxu0 0.0
  %900 = vmatprep.subr.mxu0 0.0
  %901 = vmatpush1.xpose.msra.mxu0 0.0
  %902 = vmatprep.subr.mxu0 0.0
  %903 = vmatpush1.xpose.msra.mxu0 0.0
  %904 = vmatprep.subr.mxu0 0.0
  %905 = vmatpush1.xpose.msra.mxu0 0.0
  %906 = vmatprep.subr.mxu0 0.0
  %907 = vmatpush1.xpose.msra.mxu0 0.0
  %908 = vmatprep.subr.mxu0 0.0
  %909 = vmatpush1.xpose.msra.mxu0 0.0
  %910 = vmatprep.subr.mxu0 0.0
  %911 = vmatpush1.xpose.msra.mxu0 0.0
  %912 = vmatprep.subr.mxu0 0.0
  %913 = vmatpush1.xpose.msra.mxu0 0.0
  %914 = vmatprep.subr.mxu0 0.0
  %915 = vmatpush1.xpose.msra.mxu0 0.0
  %916 = vmatprep.subr.mxu0 0.0
  %917 = vmatpush1.xpose.msra.mxu0 0.0
  %918 = vmatprep.subr.mxu0 0.0
  %919 = vmatpush1.xpose.msra.mxu0 0.0
  %920 = vmatprep.subr.mxu0 0.0
  %921 = vmatpush1.xpose.msra.mxu0 0.0
  %922 = vmatprep.subr.mxu0 0.0
  %923 = vmatpush1.xpose.msra.mxu0 0.0
  %924 = vmatprep.subr.mxu0 0.0
  %925 = vmatpush1.xpose.msra.mxu0 0.0
  %926 = vmatprep.subr.mxu0 0.0
  %927 = vmatpush1.xpose.msra.mxu0 0.0
  %928 = vmatprep.subr.mxu0 0.0
  %929 = vmatpush1.xpose.msra.mxu0 0.0
  %930 = vmatprep.subr.mxu0 0.0
  %931 = vmatpush1.xpose.msra.mxu0 0.0
  %932 = vmatprep.mubr.f32.mxu0 0.0
  %933 = vmatmul.mubr.f32.gmra.mrb[0].mxu0 %v860
  %v934 = vpop.f32.mrb[0].mxu0
  %v935 = vadd.f32 0.0, %v934
  %v936 = vpop.f32.mrb[0].mxu0
  %937 = vmatprep.mubr.f32.mxu0 0.0
  %938 = vmatmul.mubr.f32.gmra.mrb[0].mxu0 %v863
  %v939 = vpop.f32.mrb[0].mxu0
  %v940 = vadd.f32 0.0, %v939
  %v941 = vpop.f32.mrb[0].mxu0
  %942 = vdwg.mxu0
  %vm943 = vcmask 97280
  %944 = vst.msk [vmem:[%s16] sm:$0xff] %vm943, %v935
  %vm945 = vcmask 93184
  %946 = vst.msk [vmem:[%s16 + $0x8] sm:$0xf] %vm945, %v940
  %vm947 = vcmp.ge.s32.totalorder %v70, 4
  %v948 = vsel %vm947, %v935, -1e+30
  %v949 = vsel %vm947, %v940, -1e+30
  %v950 = vsel %vm943, %v948, -inf
  %951 = vmax.xlane.f32.xlu0 %v950
  %v952 = vpop.xlane.xlu0 %951
  %v953 = vsel %vm945, %v949, -inf
  %954 = vmax.xlane.f32.xlu0 %v953
  %v955 = vpop.xlane.xlu0 %954
  %v956 = vsub.f32 %v948, %v952
  %v957 = vsub.f32 %v949, %v955
  %v958 = vmul.f32 %v956, 1.442695
  %v959 = vpow.pop %v958
  %v960 = vmul.f32 %v957, 1.442695
  %v961 = vpow.pop %v960
  %v962 = vsel %vm943, %v959, 0.0
  %963 = vadd.xlane.f32.xlu0 %v962
  %v964 = vpop.xlane.xlu0 %963
  %v965 = vsel %vm945, %v961, 0.0
  %966 = vadd.xlane.f32.xlu0 %v965
  %v967 = vpop.xlane.xlu0 %966
  %v968 = vlog2.pop %v964
  %v969 = vmul.f32 %v968, 0.6931472
  %v970 = vlog2.pop %v967
  %v971 = vmul.f32 %v970, 0.6931472
  %v972 = vadd.f32 %v952, %v969
  %v973 = vadd.f32 %v955, %v971
  %v974 = vld [vmem:[%s1] sm:$0xff]
  %v975 = vld [vmem:[%s1 + $0x8] sm:$0xf]
  %976 = vset.pattern.permute.xlu0 0
  %977 = vperm.xlu0 %976, %v974
  %v978 = vpop.permute.xlu0 %977
  %979 = vset.pattern.permute.xlu0 0
  %980 = vperm.xlu0 %979, %v975
  %v981 = vpop.permute.xlu0 %980
  %vm982 = vcmp.eq.s32.totalorder %v70, %v978
  %vm983 = vcmp.eq.s32.totalorder %v70, %v981
  %v984 = vsel %vm982, %v935, 0.0
  %v985 = vsel %vm983, %v940, 0.0
  %v986 = vsel %vm943, %v984, 0.0
  %987 = vadd.xlane.f32.xlu0 %v986
  %v988 = vpop.xlane.xlu0 %987
  %v989 = vsel %vm945, %v985, 0.0
  %990 = vadd.xlane.f32.xlu0 %v989
  %v991 = vpop.xlane.xlu0 %990
  %vm992 = vcmp.lt.s32.totalorder %v548, 4
  %vm993 = vcmp.lt.s32.totalorder %v549, 4
  %v994 = vsub.f32 %v972, %v988
  %v995 = vsub.f32 %v973, %v991
  %v996 = vsel %vm992, %v994, 0.0
  %v997 = vsel %vm993, %v995, 0.0
  %vm998 = vcmask 7168
  %v999 = vsel %vm998, %v996, 0.0
  %vm1000 = vcmask 3072
  %v1001 = vsel %vm1000, %v997, 0.0
  %v1002 = vadd.f32 %v999, %v1001
  %1003 = vadd.xlane.f32.xlu0 %v1002
  %v1004 = vpop.xlane.xlu0 %1003
  %v1005 = vrot.slane %v1004, 4
  %v1006 = vadd.f32 %v1004, %v1005
  %v1007 = vrot.slane %v1006, 2
  %v1008 = vadd.f32 %v1006, %v1007
  %v1009 = vrot.slane %v1008, 1
  %v1010 = vadd.f32 %v1008, %v1009
  %s1011 = vtos %v1010
  %v1012 = vrcp.pop 4.0
  %s1013 = vtos %v1012
  %s1014 = smul.f32 %s1011, %s1013
  %v1015 = vpack.c.bf16 %v536, %v535
  %v1016 = vpack.c.bf16 %v538, %v537
  %v1017 = vpack.c.bf16 %v540, %v539
  %v1018 = vpack.c.bf16 %v542, %v541
  %v1019 = vpack.c.bf16 %v544, %v543
  %v1020 = vpack.c.bf16 %v546, %v545
  %v1021 = vld [vmem:[%s10] sm:$0xf]
  %v1022 = vld [vmem:[%s10 + $0x4] sm:$0xf]
  %v1023 = vld [vmem:[%s10 + $0x8] sm:$0xf]
  %v1024 = vld [vmem:[%s10 + $0xc] sm:$0xf]
  %v1025 = vld [vmem:[%s10 + $0x10] sm:$0xf]
  %v1026 = vld [vmem:[%s10 + $0x14] sm:$0xf]
  %v1027 = vld [vmem:[%s10 + $0x18] sm:$0xf]
  %v1028 = vld [vmem:[%s10 + $0x1c] sm:$0xf]
  %v1029 = vld [vmem:[%s10 + $0x20] sm:$0xf]
  %v1030 = vld [vmem:[%s10 + $0x24] sm:$0xf]
  %v1031 = vld [vmem:[%s10 + $0x28] sm:$0xf]
  %v1032 = vld [vmem:[%s10 + $0x2c] sm:$0xf]
  %v1033 = vld [vmem:[%s10 + $0x30] sm:$0xf]
  %v1034 = vld [vmem:[%s10 + $0x34] sm:$0xf]
  %v1035 = vld [vmem:[%s10 + $0x38] sm:$0xf]
  %v1036 = vld [vmem:[%s10 + $0x3c] sm:$0xf]
  %v1037 = vld [vmem:[%s11] sm:$0x1]
  %v1039 = vlaneseq
  %v1040 = vshrl.u32 %v1039, 7
  %v1041 = vsub.s32 0, %v1040
  %v1042 = vrot.slane %v1037, %v1041
  %v1060 = vunpack.c.l.b16 %v1021
  %v1061 = vunpack.c.l.b16 %v1022
  %v1062 = vunpack.c.l.b16 %v1023
  %v1063 = vunpack.c.l.b16 %v1024
  %v1064 = vunpack.c.l.b16 %v1025
  %v1065 = vunpack.c.l.b16 %v1026
  %v1066 = vunpack.c.l.b16 %v1027
  %v1067 = vunpack.c.l.b16 %v1028
  %v1068 = vunpack.c.l.b16 %v1029
  %v1069 = vunpack.c.l.b16 %v1030
  %v1070 = vunpack.c.l.b16 %v1031
  %v1071 = vunpack.c.l.b16 %v1032
  %v1072 = vunpack.c.l.b16 %v1033
  %v1073 = vunpack.c.l.b16 %v1034
  %v1074 = vunpack.c.l.b16 %v1035
  %v1075 = vunpack.c.l.b16 %v1036
  %v1076 = vpack.c.b16 %v1061, %v1060
  %v1077 = vpack.c.b16 %v1063, %v1062
  %v1078 = vpack.c.b16 %v1065, %v1064
  %v1079 = vpack.c.b16 %v1067, %v1066
  %v1080 = vpack.c.b16 %v1069, %v1068
  %v1081 = vpack.c.b16 %v1071, %v1070
  %v1082 = vpack.c.b16 %v1073, %v1072
  %v1083 = vpack.c.b16 %v1075, %v1074
  %1092 = vmatprep.subr.bf16.mxu0 0
  %1093 = vmatpush1.bf16.msra.mxu0 %v1076
  %1094 = vmatprep.subr.bf16.mxu0 0
  %1095 = vmatpush1.bf16.msra.mxu0 %v1077
  %1096 = vmatprep.subr.bf16.mxu0 0
  %1097 = vmatpush1.bf16.msra.mxu0 %v1078
  %1098 = vmatprep.subr.bf16.mxu0 0
  %1099 = vmatpush1.bf16.msra.mxu0 %v1079
  %1100 = vmatprep.subr.bf16.mxu0 0
  %1101 = vmatpush1.bf16.msra.mxu0 %v1080
  %1102 = vmatprep.subr.bf16.mxu0 0
  %1103 = vmatpush1.bf16.msra.mxu0 %v1081
  %1104 = vmatprep.subr.bf16.mxu0 0
  %1105 = vmatpush1.bf16.msra.mxu0 %v1082
  %1106 = vmatprep.subr.bf16.mxu0 0
  %1107 = vmatpush1.bf16.msra.mxu0 %v1083
  %1108 = vmatprep.subr.bf16.mxu0 0
  %1109 = vmatpush1.bf16.msra.mxu0 0
  %1110 = vmatprep.subr.bf16.mxu0 0
  %1111 = vmatpush1.bf16.msra.mxu0 0
  %1112 = vmatprep.subr.bf16.mxu0 0
  %1113 = vmatpush1.bf16.msra.mxu0 0
  %1114 = vmatprep.subr.bf16.mxu0 0
  %1115 = vmatpush1.bf16.msra.mxu0 0
  %1116 = vmatprep.subr.bf16.mxu0 0
  %1117 = vmatpush1.bf16.msra.mxu0 0
  %1118 = vmatprep.subr.bf16.mxu0 0
  %1119 = vmatpush1.bf16.msra.mxu0 0
  %1120 = vmatprep.subr.bf16.mxu0 0
  %1121 = vmatpush1.bf16.msra.mxu0 0
  %1122 = vmatprep.subr.bf16.mxu0 0
  %1123 = vmatpush1.bf16.msra.mxu0 0
  %1124 = vmatprep.mubr.bf16.mxu0 0
  %1125 = vmatmul.mubr.bf16.gmra.mrb[0].mxu0 %v1015
  %v1126 = vpop.f32.mrb[0].mxu0
  %v1127 = vadd.f32 %v1042, %v1126
  %v1128 = vpop.f32.mrb[0].mxu0
  %v1129 = vpop.f32.mrb[0].mxu0
  %v1130 = vadd.f32 %v1042, %v1129
  %v1131 = vpop.f32.mrb[0].mxu0
  %1132 = vmatprep.mubr.bf16.mxu0 0
  %1133 = vmatmul.mubr.bf16.gmra.mrb[0].mxu0 %v1016
  %v1134 = vpop.f32.mrb[0].mxu0
  %v1135 = vadd.f32 %v1042, %v1134
  %v1136 = vpop.f32.mrb[0].mxu0
  %v1137 = vpop.f32.mrb[0].mxu0
  %v1138 = vadd.f32 %v1042, %v1137
  %v1139 = vpop.f32.mrb[0].mxu0
  %1140 = vmatprep.mubr.bf16.mxu0 0
  %1141 = vmatmul.mubr.bf16.gmra.mrb[0].mxu0 %v1017
  %v1142 = vpop.f32.mrb[0].mxu0
  %v1143 = vadd.f32 %v1042, %v1142
  %v1144 = vpop.f32.mrb[0].mxu0
  %v1145 = vpop.f32.mrb[0].mxu0
  %v1146 = vadd.f32 %v1042, %v1145
  %v1147 = vpop.f32.mrb[0].mxu0
  %1148 = vmatprep.mubr.bf16.mxu0 0
  %1149 = vmatmul.mubr.bf16.gmra.mrb[0].mxu0 %v1018
  %v1150 = vpop.f32.mrb[0].mxu0
  %v1151 = vadd.f32 %v1042, %v1150
  %v1152 = vpop.f32.mrb[0].mxu0
  %v1153 = vpop.f32.mrb[0].mxu0
  %v1154 = vadd.f32 %v1042, %v1153
  %v1155 = vpop.f32.mrb[0].mxu0
  %1156 = vmatprep.mubr.bf16.mxu0 0
  %1157 = vmatmul.mubr.bf16.gmra.mrb[0].mxu0 %v1019
  %v1158 = vpop.f32.mrb[0].mxu0
  %v1159 = vadd.f32 %v1042, %v1158
  %v1160 = vpop.f32.mrb[0].mxu0
  %v1161 = vpop.f32.mrb[0].mxu0
  %v1162 = vadd.f32 %v1042, %v1161
  %v1163 = vpop.f32.mrb[0].mxu0
  %1164 = vmatprep.mubr.bf16.mxu0 0
  %1165 = vmatmul.mubr.bf16.gmra.mrb[0].mxu0 %v1020
  %v1166 = vpop.f32.mrb[0].mxu0
  %v1167 = vadd.f32 %v1042, %v1166
  %v1168 = vpop.f32.mrb[0].mxu0
  %v1169 = vpop.f32.mrb[0].mxu0
  %v1170 = vadd.f32 %v1042, %v1169
  %v1171 = vpop.f32.mrb[0].mxu0
  %1172 = vdwg.mxu0
  %v1173 = vmul.f32 %v1127, 0.5
  %v1174 = vmul.f32 %v1130, 0.5
  %v1175 = vmul.f32 %v1135, 0.5
  %v1176 = vmul.f32 %v1138, 0.5
  %v1177 = vmul.f32 %v1143, 0.5
  %v1178 = vmul.f32 %v1146, 0.5
  %v1179 = vmul.f32 %v1151, 0.5
  %v1180 = vmul.f32 %v1154, 0.5
  %v1181 = vmul.f32 %v1159, 0.5
  %v1182 = vmul.f32 %v1162, 0.5
  %v1183 = vmul.f32 %v1167, 0.5
  %v1184 = vmul.f32 %v1170, 0.5
  %v1185 = vmul.f32 %v1127, 0.044715
  %v1186 = vmul.f32 %v1130, 0.044715
  %v1187 = vmul.f32 %v1135, 0.044715
  %v1188 = vmul.f32 %v1138, 0.044715
  %v1189 = vmul.f32 %v1143, 0.044715
  %v1190 = vmul.f32 %v1146, 0.044715
  %v1191 = vmul.f32 %v1151, 0.044715
  %v1192 = vmul.f32 %v1154, 0.044715
  %v1193 = vmul.f32 %v1159, 0.044715
  %v1194 = vmul.f32 %v1162, 0.044715
  %v1195 = vmul.f32 %v1167, 0.044715
  %v1196 = vmul.f32 %v1170, 0.044715
  %v1197 = vmul.f32 %v1185, %v1127
  %v1198 = vmul.f32 %v1186, %v1130
  %v1199 = vmul.f32 %v1187, %v1135
  %v1200 = vmul.f32 %v1188, %v1138
  %v1201 = vmul.f32 %v1189, %v1143
  %v1202 = vmul.f32 %v1190, %v1146
  %v1203 = vmul.f32 %v1191, %v1151
  %v1204 = vmul.f32 %v1192, %v1154
  %v1205 = vmul.f32 %v1193, %v1159
  %v1206 = vmul.f32 %v1194, %v1162
  %v1207 = vmul.f32 %v1195, %v1167
  %v1208 = vmul.f32 %v1196, %v1170
  %v1209 = vmul.f32 %v1197, %v1127
  %v1210 = vmul.f32 %v1198, %v1130
  %v1211 = vmul.f32 %v1199, %v1135
  %v1212 = vmul.f32 %v1200, %v1138
  %v1213 = vmul.f32 %v1201, %v1143
  %v1214 = vmul.f32 %v1202, %v1146
  %v1215 = vmul.f32 %v1203, %v1151
  %v1216 = vmul.f32 %v1204, %v1154
  %v1217 = vmul.f32 %v1205, %v1159
  %v1218 = vmul.f32 %v1206, %v1162
  %v1219 = vmul.f32 %v1207, %v1167
  %v1220 = vmul.f32 %v1208, %v1170
  %v1221 = vadd.f32 %v1127, %v1209
  %v1222 = vadd.f32 %v1130, %v1210
  %v1223 = vadd.f32 %v1135, %v1211
  %v1224 = vadd.f32 %v1138, %v1212
  %v1225 = vadd.f32 %v1143, %v1213
  %v1226 = vadd.f32 %v1146, %v1214
  %v1227 = vadd.f32 %v1151, %v1215
  %v1228 = vadd.f32 %v1154, %v1216
  %v1229 = vadd.f32 %v1159, %v1217
  %v1230 = vadd.f32 %v1162, %v1218
  %v1231 = vadd.f32 %v1167, %v1219
  %v1232 = vadd.f32 %v1170, %v1220
  %v1233 = vmul.f32 %v1221, 0.7978845
  %v1234 = vmul.f32 %v1222, 0.7978845
  %v1235 = vmul.f32 %v1223, 0.7978845
  %v1236 = vmul.f32 %v1224, 0.7978845
  %v1237 = vmul.f32 %v1225, 0.7978845
  %v1238 = vmul.f32 %v1226, 0.7978845
  %v1239 = vmul.f32 %v1227, 0.7978845
  %v1240 = vmul.f32 %v1228, 0.7978845
  %v1241 = vmul.f32 %v1229, 0.7978845
  %v1242 = vmul.f32 %v1230, 0.7978845
  %v1243 = vmul.f32 %v1231, 0.7978845
  %v1244 = vmul.f32 %v1232, 0.7978845
  %v1245 = vtanh.pop %v1233
  %v1246 = vtanh.pop %v1234
  %v1247 = vtanh.pop %v1235
  %v1248 = vtanh.pop %v1236
  %v1249 = vtanh.pop %v1237
  %v1250 = vtanh.pop %v1238
  %v1251 = vtanh.pop %v1239
  %v1252 = vtanh.pop %v1240
  %v1253 = vtanh.pop %v1241
  %v1254 = vtanh.pop %v1242
  %v1255 = vtanh.pop %v1243
  %v1256 = vtanh.pop %v1244
  %v1257 = vadd.f32 %v1245, 1.0
  %v1258 = vadd.f32 %v1246, 1.0
  %v1259 = vadd.f32 %v1247, 1.0
  %v1260 = vadd.f32 %v1248, 1.0
  %v1261 = vadd.f32 %v1249, 1.0
  %v1262 = vadd.f32 %v1250, 1.0
  %v1263 = vadd.f32 %v1251, 1.0
  %v1264 = vadd.f32 %v1252, 1.0
  %v1265 = vadd.f32 %v1253, 1.0
  %v1266 = vadd.f32 %v1254, 1.0
  %v1267 = vadd.f32 %v1255, 1.0
  %v1268 = vadd.f32 %v1256, 1.0
  %v1269 = vmul.f32 %v1173, %v1257
  %v1270 = vmul.f32 %v1174, %v1258
  %v1271 = vmul.f32 %v1175, %v1259
  %v1272 = vmul.f32 %v1176, %v1260
  %v1273 = vmul.f32 %v1177, %v1261
  %v1274 = vmul.f32 %v1178, %v1262
  %v1275 = vmul.f32 %v1179, %v1263
  %v1276 = vmul.f32 %v1180, %v1264
  %v1277 = vmul.f32 %v1181, %v1265
  %v1278 = vmul.f32 %v1182, %v1266
  %v1279 = vmul.f32 %v1183, %v1267
  %v1280 = vmul.f32 %v1184, %v1268
  %1281 = vadd.xlane.f32.xlu0 %v1269
  %v1282 = vpop.xlane.xlu0 %1281
  %1283 = vadd.xlane.f32.xlu0 %v1270
  %v1284 = vpop.xlane.xlu0 %1283
  %1285 = vadd.xlane.f32.xlu0 %v1271
  %v1286 = vpop.xlane.xlu0 %1285
  %1287 = vadd.xlane.f32.xlu0 %v1272
  %v1288 = vpop.xlane.xlu0 %1287
  %1289 = vadd.xlane.f32.xlu0 %v1273
  %v1290 = vpop.xlane.xlu0 %1289
  %1291 = vadd.xlane.f32.xlu0 %v1274
  %v1292 = vpop.xlane.xlu0 %1291
  %1293 = vadd.xlane.f32.xlu0 %v1275
  %v1294 = vpop.xlane.xlu0 %1293
  %1295 = vadd.xlane.f32.xlu0 %v1276
  %v1296 = vpop.xlane.xlu0 %1295
  %1297 = vadd.xlane.f32.xlu0 %v1277
  %v1298 = vpop.xlane.xlu0 %1297
  %1299 = vadd.xlane.f32.xlu0 %v1278
  %v1300 = vpop.xlane.xlu0 %1299
  %1301 = vadd.xlane.f32.xlu0 %v1279
  %v1302 = vpop.xlane.xlu0 %1301
  %1303 = vadd.xlane.f32.xlu0 %v1280
  %v1304 = vpop.xlane.xlu0 %1303
  %v1305 = vrcp.pop 128.0
  %v1306 = vmul.f32 %v1282, %v1305
  %v1307 = vmul.f32 %v1284, %v1305
  %v1308 = vmul.f32 %v1286, %v1305
  %v1309 = vmul.f32 %v1288, %v1305
  %v1310 = vmul.f32 %v1290, %v1305
  %v1311 = vmul.f32 %v1292, %v1305
  %v1312 = vmul.f32 %v1294, %v1305
  %v1313 = vmul.f32 %v1296, %v1305
  %v1314 = vmul.f32 %v1298, %v1305
  %v1315 = vmul.f32 %v1300, %v1305
  %v1316 = vmul.f32 %v1302, %v1305
  %v1317 = vmul.f32 %v1304, %v1305
  %v1318 = vsub.f32 %v1269, %v1306
  %v1319 = vsub.f32 %v1270, %v1307
  %v1320 = vsub.f32 %v1271, %v1308
  %v1321 = vsub.f32 %v1272, %v1309
  %v1322 = vsub.f32 %v1273, %v1310
  %v1323 = vsub.f32 %v1274, %v1311
  %v1324 = vsub.f32 %v1275, %v1312
  %v1325 = vsub.f32 %v1276, %v1313
  %v1326 = vsub.f32 %v1277, %v1314
  %v1327 = vsub.f32 %v1278, %v1315
  %v1328 = vsub.f32 %v1279, %v1316
  %v1329 = vsub.f32 %v1280, %v1317
  %v1330 = vmul.f32 %v1318, %v1318
  %v1331 = vmul.f32 %v1319, %v1319
  %v1332 = vmul.f32 %v1320, %v1320
  %v1333 = vmul.f32 %v1321, %v1321
  %v1334 = vmul.f32 %v1322, %v1322
  %v1335 = vmul.f32 %v1323, %v1323
  %v1336 = vmul.f32 %v1324, %v1324
  %v1337 = vmul.f32 %v1325, %v1325
  %v1338 = vmul.f32 %v1326, %v1326
  %v1339 = vmul.f32 %v1327, %v1327
  %v1340 = vmul.f32 %v1328, %v1328
  %v1341 = vmul.f32 %v1329, %v1329
  %1342 = vadd.xlane.f32.xlu0 %v1330
  %v1343 = vpop.xlane.xlu0 %1342
  %1344 = vadd.xlane.f32.xlu0 %v1331
  %v1345 = vpop.xlane.xlu0 %1344
  %1346 = vadd.xlane.f32.xlu0 %v1332
  %v1347 = vpop.xlane.xlu0 %1346
  %1348 = vadd.xlane.f32.xlu0 %v1333
  %v1349 = vpop.xlane.xlu0 %1348
  %1350 = vadd.xlane.f32.xlu0 %v1334
  %v1351 = vpop.xlane.xlu0 %1350
  %1352 = vadd.xlane.f32.xlu0 %v1335
  %v1353 = vpop.xlane.xlu0 %1352
  %1354 = vadd.xlane.f32.xlu0 %v1336
  %v1355 = vpop.xlane.xlu0 %1354
  %1356 = vadd.xlane.f32.xlu0 %v1337
  %v1357 = vpop.xlane.xlu0 %1356
  %1358 = vadd.xlane.f32.xlu0 %v1338
  %v1359 = vpop.xlane.xlu0 %1358
  %1360 = vadd.xlane.f32.xlu0 %v1339
  %v1361 = vpop.xlane.xlu0 %1360
  %1362 = vadd.xlane.f32.xlu0 %v1340
  %v1363 = vpop.xlane.xlu0 %1362
  %1364 = vadd.xlane.f32.xlu0 %v1341
  %v1365 = vpop.xlane.xlu0 %1364
  %v1366 = vmul.f32 %v1343, %v1305
  %v1367 = vmul.f32 %v1345, %v1305
  %v1368 = vmul.f32 %v1347, %v1305
  %v1369 = vmul.f32 %v1349, %v1305
  %v1370 = vmul.f32 %v1351, %v1305
  %v1371 = vmul.f32 %v1353, %v1305
  %v1372 = vmul.f32 %v1355, %v1305
  %v1373 = vmul.f32 %v1357, %v1305
  %v1374 = vmul.f32 %v1359, %v1305
  %v1375 = vmul.f32 %v1361, %v1305
  %v1376 = vmul.f32 %v1363, %v1305
  %v1377 = vmul.f32 %v1365, %v1305
  %v1378 = vadd.f32 %v1366, 1e-12
  %v1379 = vadd.f32 %v1367, 1e-12
  %v1380 = vadd.f32 %v1368, 1e-12
  %v1381 = vadd.f32 %v1369, 1e-12
  %v1382 = vadd.f32 %v1370, 1e-12
  %v1383 = vadd.f32 %v1371, 1e-12
  %v1384 = vadd.f32 %v1372, 1e-12
  %v1385 = vadd.f32 %v1373, 1e-12
  %v1386 = vadd.f32 %v1374, 1e-12
  %v1387 = vadd.f32 %v1375, 1e-12
  %v1388 = vadd.f32 %v1376, 1e-12
  %v1389 = vadd.f32 %v1377, 1e-12
  %v1390 = vrsqrt.pop %v1378
  %v1391 = vrsqrt.pop %v1379
  %v1392 = vrsqrt.pop %v1380
  %v1393 = vrsqrt.pop %v1381
  %v1394 = vrsqrt.pop %v1382
  %v1395 = vrsqrt.pop %v1383
  %v1396 = vrsqrt.pop %v1384
  %v1397 = vrsqrt.pop %v1385
  %v1398 = vrsqrt.pop %v1386
  %v1399 = vrsqrt.pop %v1387
  %v1400 = vrsqrt.pop %v1388
  %v1401 = vrsqrt.pop %v1389
  %v1402 = vmul.f32 %v1318, %v1390
  %v1403 = vmul.f32 %v1319, %v1391
  %v1404 = vmul.f32 %v1320, %v1392
  %v1405 = vmul.f32 %v1321, %v1393
  %v1406 = vmul.f32 %v1322, %v1394
  %v1407 = vmul.f32 %v1323, %v1395
  %v1408 = vmul.f32 %v1324, %v1396
  %v1409 = vmul.f32 %v1325, %v1397
  %v1410 = vmul.f32 %v1326, %v1398
  %v1411 = vmul.f32 %v1327, %v1399
  %v1412 = vmul.f32 %v1328, %v1400
  %v1413 = vmul.f32 %v1329, %v1401
  %v1414 = vld [vmem:[%s12] sm:$0x1]
  %v1416 = vlaneseq
  %v1417 = vshrl.u32 %v1416, 7
  %v1418 = vsub.s32 0, %v1417
  %v1419 = vrot.slane %v1414, %v1418
  %v1421 = vmul.f32 %v1402, %v1419
  %v1422 = vmul.f32 %v1403, %v1419
  %v1423 = vmul.f32 %v1404, %v1419
  %v1424 = vmul.f32 %v1405, %v1419
  %v1425 = vmul.f32 %v1406, %v1419
  %v1426 = vmul.f32 %v1407, %v1419
  %v1427 = vmul.f32 %v1408, %v1419
  %v1428 = vmul.f32 %v1409, %v1419
  %v1429 = vmul.f32 %v1410, %v1419
  %v1430 = vmul.f32 %v1411, %v1419
  %v1431 = vmul.f32 %v1412, %v1419
  %v1432 = vmul.f32 %v1413, %v1419
  %v1433 = vld [vmem:[%s13] sm:$0x1]
  %v1435 = vlaneseq
  %v1436 = vshrl.u32 %v1435, 7
  %v1437 = vsub.s32 0, %v1436
  %v1438 = vrot.slane %v1433, %v1437
  %v1440 = vadd.f32 %v1421, %v1438
  %v1441 = vadd.f32 %v1422, %v1438
  %v1442 = vadd.f32 %v1423, %v1438
  %v1443 = vadd.f32 %v1424, %v1438
  %v1444 = vadd.f32 %v1425, %v1438
  %v1445 = vadd.f32 %v1426, %v1438
  %v1446 = vadd.f32 %v1427, %v1438
  %v1447 = vadd.f32 %v1428, %v1438
  %v1448 = vadd.f32 %v1429, %v1438
  %v1449 = vadd.f32 %v1430, %v1438
  %v1450 = vadd.f32 %v1431, %v1438
  %v1451 = vadd.f32 %v1432, %v1438
  %v1452 = vpack.c.bf16 %v1441, %v1440
  %v1453 = vpack.c.bf16 %v1443, %v1442
  %v1454 = vpack.c.bf16 %v1445, %v1444
  %v1455 = vpack.c.bf16 %v1447, %v1446
  %v1456 = vpack.c.bf16 %v1449, %v1448
  %v1457 = vpack.c.bf16 %v1451, %v1450
  %v1458 = vld [vmem:[%s14] sm:$0xff]
  %v1459 = vld [vmem:[%s14 + $0x8] sm:$0xff]
  %v1460 = vld [vmem:[%s14 + $0x10] sm:$0xff]
  %v1461 = vld [vmem:[%s14 + $0x18] sm:$0xff]
  %v1462 = vld [vmem:[%s14 + $0x20] sm:$0xff]
  %v1463 = vld [vmem:[%s14 + $0x28] sm:$0xff]
  %v1464 = vld [vmem:[%s14 + $0x30] sm:$0xff]
  %v1465 = vld [vmem:[%s14 + $0x38] sm:$0xff]
  %v1466 = vld [vmem:[%s14 + $0x40] sm:$0xff]
  %v1467 = vld [vmem:[%s14 + $0x48] sm:$0xff]
  %v1468 = vld [vmem:[%s14 + $0x50] sm:$0xff]
  %v1469 = vld [vmem:[%s14 + $0x58] sm:$0xff]
  %v1470 = vld [vmem:[%s14 + $0x60] sm:$0xff]
  %v1471 = vld [vmem:[%s14 + $0x68] sm:$0xff]
  %v1472 = vld [vmem:[%s14 + $0x70] sm:$0xff]
  %v1473 = vld [vmem:[%s14 + $0x78] sm:$0xff]
  %v1474 = vld [vmem:[%s15] sm:$0x3]
  %v1476 = vlaneseq
  %v1477 = vshrl.u32 %v1476, 7
  %v1478 = vsub.s32 0, %v1477
  %v1479 = vrot.slane %v1474, %v1478
  %v1480 = vlaneseq
  %v1481 = vshrl.u32 %v1480, 7
  %v1482 = vsub.s32 1, %v1481
  %v1483 = vrot.slane %v1474, %v1482
  %v1502 = vunpack.c.l.b16 %v1458
  %v1503 = vunpack.c.h.b16 %v1458
  %v1504 = vunpack.c.l.b16 %v1459
  %v1505 = vunpack.c.h.b16 %v1459
  %v1506 = vunpack.c.l.b16 %v1460
  %v1507 = vunpack.c.h.b16 %v1460
  %v1508 = vunpack.c.l.b16 %v1461
  %v1509 = vunpack.c.h.b16 %v1461
  %v1510 = vunpack.c.l.b16 %v1462
  %v1511 = vunpack.c.h.b16 %v1462
  %v1512 = vunpack.c.l.b16 %v1463
  %v1513 = vunpack.c.h.b16 %v1463
  %v1514 = vunpack.c.l.b16 %v1464
  %v1515 = vunpack.c.h.b16 %v1464
  %v1516 = vunpack.c.l.b16 %v1465
  %v1517 = vunpack.c.h.b16 %v1465
  %v1518 = vunpack.c.l.b16 %v1466
  %v1519 = vunpack.c.h.b16 %v1466
  %v1520 = vunpack.c.l.b16 %v1467
  %v1521 = vunpack.c.h.b16 %v1467
  %v1522 = vunpack.c.l.b16 %v1468
  %v1523 = vunpack.c.h.b16 %v1468
  %v1524 = vunpack.c.l.b16 %v1469
  %v1525 = vunpack.c.h.b16 %v1469
  %v1526 = vunpack.c.l.b16 %v1470
  %v1527 = vunpack.c.h.b16 %v1470
  %v1528 = vunpack.c.l.b16 %v1471
  %v1529 = vunpack.c.h.b16 %v1471
  %v1530 = vunpack.c.l.b16 %v1472
  %v1531 = vunpack.c.h.b16 %v1472
  %v1532 = vunpack.c.l.b16 %v1473
  %v1533 = vunpack.c.h.b16 %v1473
  %v1534 = vpack.c.b16 %v1504, %v1502
  %v1535 = vpack.c.b16 %v1505, %v1503
  %v1536 = vpack.c.b16 %v1508, %v1506
  %v1537 = vpack.c.b16 %v1509, %v1507
  %v1538 = vpack.c.b16 %v1512, %v1510
  %v1539 = vpack.c.b16 %v1513, %v1511
  %v1540 = vpack.c.b16 %v1516, %v1514
  %v1541 = vpack.c.b16 %v1517, %v1515
  %v1542 = vpack.c.b16 %v1520, %v1518
  %v1543 = vpack.c.b16 %v1521, %v1519
  %v1544 = vpack.c.b16 %v1524, %v1522
  %v1545 = vpack.c.b16 %v1525, %v1523
  %v1546 = vpack.c.b16 %v1528, %v1526
  %v1547 = vpack.c.b16 %v1529, %v1527
  %v1548 = vpack.c.b16 %v1532, %v1530
  %v1549 = vpack.c.b16 %v1533, %v1531
  %1566 = vmatprep.subr.bf16.mxu0 %v1535
  %1567 = vmatpush1.bf16.msra.mxu0 %v1534
  %1568 = vmatprep.subr.bf16.mxu0 %v1537
  %1569 = vmatpush1.bf16.msra.mxu0 %v1536
  %1570 = vmatprep.subr.bf16.mxu0 %v1539
  %1571 = vmatpush1.bf16.msra.mxu0 %v1538
  %1572 = vmatprep.subr.bf16.mxu0 %v1541
  %1573 = vmatpush1.bf16.msra.mxu0 %v1540
  %1574 = vmatprep.subr.bf16.mxu0 %v1543
  %1575 = vmatpush1.bf16.msra.mxu0 %v1542
  %1576 = vmatprep.subr.bf16.mxu0 %v1545
  %1577 = vmatpush1.bf16.msra.mxu0 %v1544
  %1578 = vmatprep.subr.bf16.mxu0 %v1547
  %1579 = vmatpush1.bf16.msra.mxu0 %v1546
  %1580 = vmatprep.subr.bf16.mxu0 %v1549
  %1581 = vmatpush1.bf16.msra.mxu0 %v1548
  %1582 = vmatprep.subr.bf16.mxu0 0
  %1583 = vmatpush1.bf16.msra.mxu0 0
  %1584 = vmatprep.subr.bf16.mxu0 0
  %1585 = vmatpush1.bf16.msra.mxu0 0
  %1586 = vmatprep.subr.bf16.mxu0 0
  %1587 = vmatpush1.bf16.msra.mxu0 0
  %1588 = vmatprep.subr.bf16.mxu0 0
  %1589 = vmatpush1.bf16.msra.mxu0 0
  %1590 = vmatprep.subr.bf16.mxu0 0
  %1591 = vmatpush1.bf16.msra.mxu0 0
  %1592 = vmatprep.subr.bf16.mxu0 0
  %1593 = vmatpush1.bf16.msra.mxu0 0
  %1594 = vmatprep.subr.bf16.mxu0 0
  %1595 = vmatpush1.bf16.msra.mxu0 0
  %1596 = vmatprep.subr.bf16.mxu0 0
  %1597 = vmatpush1.bf16.msra.mxu0 0
  %1598 = vmatprep.mubr.bf16.mxu0 0
  %1599 = vmatmul.mubr.bf16.gmra.mrb[0].mxu0 %v1452
  %v1600 = vpop.f32.mrb[0].mxu0
  %v1601 = vadd.f32 %v1479, %v1600
  %v1602 = vpop.f32.mrb[0].mxu0
  %v1603 = vadd.f32 %v1483, %v1602
  %v1604 = vpop.f32.mrb[0].mxu0
  %v1605 = vadd.f32 %v1479, %v1604
  %v1606 = vpop.f32.mrb[0].mxu0
  %v1607 = vadd.f32 %v1483, %v1606
  %1608 = vmatprep.mubr.bf16.mxu0 0
  %1609 = vmatmul.mubr.bf16.gmra.mrb[0].mxu0 %v1453
  %v1610 = vpop.f32.mrb[0].mxu0
  %v1611 = vadd.f32 %v1479, %v1610
  %v1612 = vpop.f32.mrb[0].mxu0
  %v1613 = vadd.f32 %v1483, %v1612
  %v1614 = vpop.f32.mrb[0].mxu0
  %v1615 = vadd.f32 %v1479, %v1614
  %v1616 = vpop.f32.mrb[0].mxu0
  %v1617 = vadd.f32 %v1483, %v1616
  %1618 = vmatprep.mubr.bf16.mxu0 0
  %1619 = vmatmul.mubr.bf16.gmra.mrb[0].mxu0 %v1454
  %v1620 = vpop.f32.mrb[0].mxu0
  %v1621 = vadd.f32 %v1479, %v1620
  %v1622 = vpop.f32.mrb[0].mxu0
  %v1623 = vadd.f32 %v1483, %v1622
  %v1624 = vpop.f32.mrb[0].mxu0
  %v1625 = vadd.f32 %v1479, %v1624
  %v1626 = vpop.f32.mrb[0].mxu0
  %v1627 = vadd.f32 %v1483, %v1626
  %1628 = vmatprep.mubr.bf16.mxu0 0
  %1629 = vmatmul.mubr.bf16.gmra.mrb[0].mxu0 %v1455
  %v1630 = vpop.f32.mrb[0].mxu0
  %v1631 = vadd.f32 %v1479, %v1630
  %v1632 = vpop.f32.mrb[0].mxu0
  %v1633 = vadd.f32 %v1483, %v1632
  %v1634 = vpop.f32.mrb[0].mxu0
  %v1635 = vadd.f32 %v1479, %v1634
  %v1636 = vpop.f32.mrb[0].mxu0
  %v1637 = vadd.f32 %v1483, %v1636
  %1638 = vmatprep.mubr.bf16.mxu0 0
  %1639 = vmatmul.mubr.bf16.gmra.mrb[0].mxu0 %v1456
  %v1640 = vpop.f32.mrb[0].mxu0
  %v1641 = vadd.f32 %v1479, %v1640
  %v1642 = vpop.f32.mrb[0].mxu0
  %v1643 = vadd.f32 %v1483, %v1642
  %v1644 = vpop.f32.mrb[0].mxu0
  %v1645 = vadd.f32 %v1479, %v1644
  %v1646 = vpop.f32.mrb[0].mxu0
  %v1647 = vadd.f32 %v1483, %v1646
  %1648 = vmatprep.mubr.bf16.mxu0 0
  %1649 = vmatmul.mubr.bf16.gmra.mrb[0].mxu0 %v1457
  %v1650 = vpop.f32.mrb[0].mxu0
  %v1651 = vadd.f32 %v1479, %v1650
  %v1652 = vpop.f32.mrb[0].mxu0
  %v1653 = vadd.f32 %v1483, %v1652
  %v1654 = vpop.f32.mrb[0].mxu0
  %v1655 = vadd.f32 %v1479, %v1654
  %v1656 = vpop.f32.mrb[0].mxu0
  %v1657 = vadd.f32 %v1483, %v1656
  %1658 = vdwg.mxu0
  %v1659 = vld [vmem:[%s2] sm:$0xff]
  %v1660 = vld [vmem:[%s2 + $0x8] sm:$0xff]
  %v1661 = vld [vmem:[%s2 + $0x10] sm:$0xff]
  %v1662 = vld [vmem:[%s2 + $0x18] sm:$0xff]
  %v1663 = vld [vmem:[%s2 + $0x20] sm:$0xff]
  %v1664 = vld [vmem:[%s2 + $0x28] sm:$0xff]
  %v1665 = vld [vmem:[%s2 + $0x30] sm:$0xff]
  %v1666 = vld [vmem:[%s2 + $0x38] sm:$0xff]
  %v1667 = vld [vmem:[%s2 + $0x40] sm:$0xff]
  %v1668 = vld [vmem:[%s2 + $0x48] sm:$0xff]
  %v1669 = vld [vmem:[%s2 + $0x50] sm:$0xff]
  %v1670 = vld [vmem:[%s2 + $0x58] sm:$0xff]
  %v1671 = vmax.f32 %v1601, %v1603
  %1672 = vmax.xlane.f32.xlu0 %v1671
  %v1673 = vpop.xlane.xlu0 %1672
  %v1674 = vmax.f32 %v1605, %v1607
  %1675 = vmax.xlane.f32.xlu0 %v1674
  %v1676 = vpop.xlane.xlu0 %1675
  %v1677 = vmax.f32 %v1611, %v1613
  %1678 = vmax.xlane.f32.xlu0 %v1677
  %v1679 = vpop.xlane.xlu0 %1678
  %v1680 = vmax.f32 %v1615, %v1617
  %1681 = vmax.xlane.f32.xlu0 %v1680
  %v1682 = vpop.xlane.xlu0 %1681
  %v1683 = vmax.f32 %v1621, %v1623
  %1684 = vmax.xlane.f32.xlu0 %v1683
  %v1685 = vpop.xlane.xlu0 %1684
  %v1686 = vmax.f32 %v1625, %v1627
  %1687 = vmax.xlane.f32.xlu0 %v1686
  %v1688 = vpop.xlane.xlu0 %1687
  %v1689 = vmax.f32 %v1631, %v1633
  %1690 = vmax.xlane.f32.xlu0 %v1689
  %v1691 = vpop.xlane.xlu0 %1690
  %v1692 = vmax.f32 %v1635, %v1637
  %1693 = vmax.xlane.f32.xlu0 %v1692
  %v1694 = vpop.xlane.xlu0 %1693
  %v1695 = vmax.f32 %v1641, %v1643
  %1696 = vmax.xlane.f32.xlu0 %v1695
  %v1697 = vpop.xlane.xlu0 %1696
  %v1698 = vmax.f32 %v1645, %v1647
  %1699 = vmax.xlane.f32.xlu0 %v1698
  %v1700 = vpop.xlane.xlu0 %1699
  %v1701 = vmax.f32 %v1651, %v1653
  %1702 = vmax.xlane.f32.xlu0 %v1701
  %v1703 = vpop.xlane.xlu0 %1702
  %v1704 = vmax.f32 %v1655, %v1657
  %1705 = vmax.xlane.f32.xlu0 %v1704
  %v1706 = vpop.xlane.xlu0 %1705
  %v1707 = vsub.f32 %v1601, %v1673
  %v1708 = vsub.f32 %v1603, %v1673
  %v1709 = vsub.f32 %v1605, %v1676
  %v1710 = vsub.f32 %v1607, %v1676
  %v1711 = vsub.f32 %v1611, %v1679
  %v1712 = vsub.f32 %v1613, %v1679
  %v1713 = vsub.f32 %v1615, %v1682
  %v1714 = vsub.f32 %v1617, %v1682
  %v1715 = vsub.f32 %v1621, %v1685
  %v1716 = vsub.f32 %v1623, %v1685
  %v1717 = vsub.f32 %v1625, %v1688
  %v1718 = vsub.f32 %v1627, %v1688
  %v1719 = vsub.f32 %v1631, %v1691
  %v1720 = vsub.f32 %v1633, %v1691
  %v1721 = vsub.f32 %v1635, %v1694
  %v1722 = vsub.f32 %v1637, %v1694
  %v1723 = vsub.f32 %v1641, %v1697
  %v1724 = vsub.f32 %v1643, %v1697
  %v1725 = vsub.f32 %v1645, %v1700
  %v1726 = vsub.f32 %v1647, %v1700
  %v1727 = vsub.f32 %v1651, %v1703
  %v1728 = vsub.f32 %v1653, %v1703
  %v1729 = vsub.f32 %v1655, %v1706
  %v1730 = vsub.f32 %v1657, %v1706
  %v1731 = vmul.f32 %v1707, 1.442695
  %v1732 = vpow.pop %v1731
  %v1733 = vmul.f32 %v1708, 1.442695
  %v1734 = vpow.pop %v1733
  %v1735 = vmul.f32 %v1709, 1.442695
  %v1736 = vpow.pop %v1735
  %v1737 = vmul.f32 %v1710, 1.442695
  %v1738 = vpow.pop %v1737
  %v1739 = vmul.f32 %v1711, 1.442695
  %v1740 = vpow.pop %v1739
  %v1741 = vmul.f32 %v1712, 1.442695
  %v1742 = vpow.pop %v1741
  %v1743 = vmul.f32 %v1713, 1.442695
  %v1744 = vpow.pop %v1743
  %v1745 = vmul.f32 %v1714, 1.442695
  %v1746 = vpow.pop %v1745
  %v1747 = vmul.f32 %v1715, 1.442695
  %v1748 = vpow.pop %v1747
  %v1749 = vmul.f32 %v1716, 1.442695
  %v1750 = vpow.pop %v1749
  %v1751 = vmul.f32 %v1717, 1.442695
  %v1752 = vpow.pop %v1751
  %v1753 = vmul.f32 %v1718, 1.442695
  %v1754 = vpow.pop %v1753
  %v1755 = vmul.f32 %v1719, 1.442695
  %v1756 = vpow.pop %v1755
  %v1757 = vmul.f32 %v1720, 1.442695
  %v1758 = vpow.pop %v1757
  %v1759 = vmul.f32 %v1721, 1.442695
  %v1760 = vpow.pop %v1759
  %v1761 = vmul.f32 %v1722, 1.442695
  %v1762 = vpow.pop %v1761
  %v1763 = vmul.f32 %v1723, 1.442695
  %v1764 = vpow.pop %v1763
  %v1765 = vmul.f32 %v1724, 1.442695
  %v1766 = vpow.pop %v1765
  %v1767 = vmul.f32 %v1725, 1.442695
  %v1768 = vpow.pop %v1767
  %v1769 = vmul.f32 %v1726, 1.442695
  %v1770 = vpow.pop %v1769
  %v1771 = vmul.f32 %v1727, 1.442695
  %v1772 = vpow.pop %v1771
  %v1773 = vmul.f32 %v1728, 1.442695
  %v1774 = vpow.pop %v1773
  %v1775 = vmul.f32 %v1729, 1.442695
  %v1776 = vpow.pop %v1775
  %v1777 = vmul.f32 %v1730, 1.442695
  %v1778 = vpow.pop %v1777
  %v1779 = vadd.f32 %v1732, %v1734
  %1780 = vadd.xlane.f32.xlu0 %v1779
  %v1781 = vpop.xlane.xlu0 %1780
  %v1782 = vadd.f32 %v1736, %v1738
  %1783 = vadd.xlane.f32.xlu0 %v1782
  %v1784 = vpop.xlane.xlu0 %1783
  %v1785 = vadd.f32 %v1740, %v1742
  %1786 = vadd.xlane.f32.xlu0 %v1785
  %v1787 = vpop.xlane.xlu0 %1786
  %v1788 = vadd.f32 %v1744, %v1746
  %1789 = vadd.xlane.f32.xlu0 %v1788
  %v1790 = vpop.xlane.xlu0 %1789
  %v1791 = vadd.f32 %v1748, %v1750
  %1792 = vadd.xlane.f32.xlu0 %v1791
  %v1793 = vpop.xlane.xlu0 %1792
  %v1794 = vadd.f32 %v1752, %v1754
  %1795 = vadd.xlane.f32.xlu0 %v1794
  %v1796 = vpop.xlane.xlu0 %1795
  %v1797 = vadd.f32 %v1756, %v1758
  %1798 = vadd.xlane.f32.xlu0 %v1797
  %v1799 = vpop.xlane.xlu0 %1798
  %v1800 = vadd.f32 %v1760, %v1762
  %1801 = vadd.xlane.f32.xlu0 %v1800
  %v1802 = vpop.xlane.xlu0 %1801
  %v1803 = vadd.f32 %v1764, %v1766
  %1804 = vadd.xlane.f32.xlu0 %v1803
  %v1805 = vpop.xlane.xlu0 %1804
  %v1806 = vadd.f32 %v1768, %v1770
  %1807 = vadd.xlane.f32.xlu0 %v1806
  %v1808 = vpop.xlane.xlu0 %1807
  %v1809 = vadd.f32 %v1772, %v1774
  %1810 = vadd.xlane.f32.xlu0 %v1809
  %v1811 = vpop.xlane.xlu0 %1810
  %v1812 = vadd.f32 %v1776, %v1778
  %1813 = vadd.xlane.f32.xlu0 %v1812
  %v1814 = vpop.xlane.xlu0 %1813
  %v1815 = vlog2.pop %v1781
  %v1816 = vmul.f32 %v1815, 0.6931472
  %v1817 = vlog2.pop %v1784
  %v1818 = vmul.f32 %v1817, 0.6931472
  %v1819 = vlog2.pop %v1787
  %v1820 = vmul.f32 %v1819, 0.6931472
  %v1821 = vlog2.pop %v1790
  %v1822 = vmul.f32 %v1821, 0.6931472
  %v1823 = vlog2.pop %v1793
  %v1824 = vmul.f32 %v1823, 0.6931472
  %v1825 = vlog2.pop %v1796
  %v1826 = vmul.f32 %v1825, 0.6931472
  %v1827 = vlog2.pop %v1799
  %v1828 = vmul.f32 %v1827, 0.6931472
  %v1829 = vlog2.pop %v1802
  %v1830 = vmul.f32 %v1829, 0.6931472
  %v1831 = vlog2.pop %v1805
  %v1832 = vmul.f32 %v1831, 0.6931472
  %v1833 = vlog2.pop %v1808
  %v1834 = vmul.f32 %v1833, 0.6931472
  %v1835 = vlog2.pop %v1811
  %v1836 = vmul.f32 %v1835, 0.6931472
  %v1837 = vlog2.pop %v1814
  %v1838 = vmul.f32 %v1837, 0.6931472
  %v1839 = vadd.f32 %v1673, %v1816
  %v1840 = vadd.f32 %v1676, %v1818
  %v1841 = vadd.f32 %v1679, %v1820
  %v1842 = vadd.f32 %v1682, %v1822
  %v1843 = vadd.f32 %v1685, %v1824
  %v1844 = vadd.f32 %v1688, %v1826
  %v1845 = vadd.f32 %v1691, %v1828
  %v1846 = vadd.f32 %v1694, %v1830
  %v1847 = vadd.f32 %v1697, %v1832
  %v1848 = vadd.f32 %v1700, %v1834
  %v1849 = vadd.f32 %v1703, %v1836
  %v1850 = vadd.f32 %v1706, %v1838
  %1851 = vset.pattern.permute.xlu0 0
  %1852 = vperm.xlu0 %1851, %v1659
  %v1853 = vpop.permute.xlu0 %1852
  %1854 = vset.pattern.permute.xlu0 0
  %1855 = vperm.xlu0 %1854, %v1660
  %v1856 = vpop.permute.xlu0 %1855
  %1857 = vset.pattern.permute.xlu0 0
  %1858 = vperm.xlu0 %1857, %v1661
  %v1859 = vpop.permute.xlu0 %1858
  %1860 = vset.pattern.permute.xlu0 0
  %1861 = vperm.xlu0 %1860, %v1662
  %v1862 = vpop.permute.xlu0 %1861
  %1863 = vset.pattern.permute.xlu0 0
  %1864 = vperm.xlu0 %1863, %v1663
  %v1865 = vpop.permute.xlu0 %1864
  %1866 = vset.pattern.permute.xlu0 0
  %1867 = vperm.xlu0 %1866, %v1664
  %v1868 = vpop.permute.xlu0 %1867
  %1869 = vset.pattern.permute.xlu0 0
  %1870 = vperm.xlu0 %1869, %v1665
  %v1871 = vpop.permute.xlu0 %1870
  %1872 = vset.pattern.permute.xlu0 0
  %1873 = vperm.xlu0 %1872, %v1666
  %v1874 = vpop.permute.xlu0 %1873
  %1875 = vset.pattern.permute.xlu0 0
  %1876 = vperm.xlu0 %1875, %v1667
  %v1877 = vpop.permute.xlu0 %1876
  %1878 = vset.pattern.permute.xlu0 0
  %1879 = vperm.xlu0 %1878, %v1668
  %v1880 = vpop.permute.xlu0 %1879
  %1881 = vset.pattern.permute.xlu0 0
  %1882 = vperm.xlu0 %1881, %v1669
  %v1883 = vpop.permute.xlu0 %1882
  %1884 = vset.pattern.permute.xlu0 0
  %1885 = vperm.xlu0 %1884, %v1670
  %v1886 = vpop.permute.xlu0 %1885
  %vm1887 = vcmp.eq.s32.totalorder %v70, %v1853
  %vm1888 = vcmp.eq.s32.totalorder %v71, %v1853
  %vm1889 = vcmp.eq.s32.totalorder %v70, %v1856
  %vm1890 = vcmp.eq.s32.totalorder %v71, %v1856
  %vm1891 = vcmp.eq.s32.totalorder %v70, %v1859
  %vm1892 = vcmp.eq.s32.totalorder %v71, %v1859
  %vm1893 = vcmp.eq.s32.totalorder %v70, %v1862
  %vm1894 = vcmp.eq.s32.totalorder %v71, %v1862
  %vm1895 = vcmp.eq.s32.totalorder %v70, %v1865
  %vm1896 = vcmp.eq.s32.totalorder %v71, %v1865
  %vm1897 = vcmp.eq.s32.totalorder %v70, %v1868
  %vm1898 = vcmp.eq.s32.totalorder %v71, %v1868
  %vm1899 = vcmp.eq.s32.totalorder %v70, %v1871
  %vm1900 = vcmp.eq.s32.totalorder %v71, %v1871
  %vm1901 = vcmp.eq.s32.totalorder %v70, %v1874
  %vm1902 = vcmp.eq.s32.totalorder %v71, %v1874
  %vm1903 = vcmp.eq.s32.totalorder %v70, %v1877
  %vm1904 = vcmp.eq.s32.totalorder %v71, %v1877
  %vm1905 = vcmp.eq.s32.totalorder %v70, %v1880
  %vm1906 = vcmp.eq.s32.totalorder %v71, %v1880
  %vm1907 = vcmp.eq.s32.totalorder %v70, %v1883
  %vm1908 = vcmp.eq.s32.totalorder %v71, %v1883
  %vm1909 = vcmp.eq.s32.totalorder %v70, %v1886
  %vm1910 = vcmp.eq.s32.totalorder %v71, %v1886
  %v1911 = vsel %vm1887, %v1601, 0.0
  %v1912 = vsel %vm1888, %v1603, 0.0
  %v1913 = vsel %vm1889, %v1605, 0.0
  %v1914 = vsel %vm1890, %v1607, 0.0
  %v1915 = vsel %vm1891, %v1611, 0.0
  %v1916 = vsel %vm1892, %v1613, 0.0
  %v1917 = vsel %vm1893, %v1615, 0.0
  %v1918 = vsel %vm1894, %v1617, 0.0
  %v1919 = vsel %vm1895, %v1621, 0.0
  %v1920 = vsel %vm1896, %v1623, 0.0
  %v1921 = vsel %vm1897, %v1625, 0.0
  %v1922 = vsel %vm1898, %v1627, 0.0
  %v1923 = vsel %vm1899, %v1631, 0.0
  %v1924 = vsel %vm1900, %v1633, 0.0
  %v1925 = vsel %vm1901, %v1635, 0.0
  %v1926 = vsel %vm1902, %v1637, 0.0
  %v1927 = vsel %vm1903, %v1641, 0.0
  %v1928 = vsel %vm1904, %v1643, 0.0
  %v1929 = vsel %vm1905, %v1645, 0.0
  %v1930 = vsel %vm1906, %v1647, 0.0
  %v1931 = vsel %vm1907, %v1651, 0.0
  %v1932 = vsel %vm1908, %v1653, 0.0
  %v1933 = vsel %vm1909, %v1655, 0.0
  %v1934 = vsel %vm1910, %v1657, 0.0
  %v1935 = vadd.f32 %v1911, %v1912
  %1936 = vadd.xlane.f32.xlu0 %v1935
  %v1937 = vpop.xlane.xlu0 %1936
  %v1938 = vadd.f32 %v1913, %v1914
  %1939 = vadd.xlane.f32.xlu0 %v1938
  %v1940 = vpop.xlane.xlu0 %1939
  %v1941 = vadd.f32 %v1915, %v1916
  %1942 = vadd.xlane.f32.xlu0 %v1941
  %v1943 = vpop.xlane.xlu0 %1942
  %v1944 = vadd.f32 %v1917, %v1918
  %1945 = vadd.xlane.f32.xlu0 %v1944
  %v1946 = vpop.xlane.xlu0 %1945
  %v1947 = vadd.f32 %v1919, %v1920
  %1948 = vadd.xlane.f32.xlu0 %v1947
  %v1949 = vpop.xlane.xlu0 %1948
  %v1950 = vadd.f32 %v1921, %v1922
  %1951 = vadd.xlane.f32.xlu0 %v1950
  %v1952 = vpop.xlane.xlu0 %1951
  %v1953 = vadd.f32 %v1923, %v1924
  %1954 = vadd.xlane.f32.xlu0 %v1953
  %v1955 = vpop.xlane.xlu0 %1954
  %v1956 = vadd.f32 %v1925, %v1926
  %1957 = vadd.xlane.f32.xlu0 %v1956
  %v1958 = vpop.xlane.xlu0 %1957
  %v1959 = vadd.f32 %v1927, %v1928
  %1960 = vadd.xlane.f32.xlu0 %v1959
  %v1961 = vpop.xlane.xlu0 %1960
  %v1962 = vadd.f32 %v1929, %v1930
  %1963 = vadd.xlane.f32.xlu0 %v1962
  %v1964 = vpop.xlane.xlu0 %1963
  %v1965 = vadd.f32 %v1931, %v1932
  %1966 = vadd.xlane.f32.xlu0 %v1965
  %v1967 = vpop.xlane.xlu0 %1966
  %v1968 = vadd.f32 %v1933, %v1934
  %1969 = vadd.xlane.f32.xlu0 %v1968
  %v1970 = vpop.xlane.xlu0 %1969
  %vm1971 = vcmp.ne.s32.totalorder %v1659, 4294967196
  %vm1972 = vcmp.ne.s32.totalorder %v1660, 4294967196
  %vm1973 = vcmp.ne.s32.totalorder %v1661, 4294967196
  %vm1974 = vcmp.ne.s32.totalorder %v1662, 4294967196
  %vm1975 = vcmp.ne.s32.totalorder %v1663, 4294967196
  %vm1976 = vcmp.ne.s32.totalorder %v1664, 4294967196
  %vm1977 = vcmp.ne.s32.totalorder %v1665, 4294967196
  %vm1978 = vcmp.ne.s32.totalorder %v1666, 4294967196
  %vm1979 = vcmp.ne.s32.totalorder %v1667, 4294967196
  %vm1980 = vcmp.ne.s32.totalorder %v1668, 4294967196
  %vm1981 = vcmp.ne.s32.totalorder %v1669, 4294967196
  %vm1982 = vcmp.ne.s32.totalorder %v1670, 4294967196
  %v1983 = vsel %vm1971, 1, 0
  %v1984 = vsel %vm1972, 1, 0
  %v1985 = vsel %vm1973, 1, 0
  %v1986 = vsel %vm1974, 1, 0
  %v1987 = vsel %vm1975, 1, 0
  %v1988 = vsel %vm1976, 1, 0
  %v1989 = vsel %vm1977, 1, 0
  %v1990 = vsel %vm1978, 1, 0
  %v1991 = vsel %vm1979, 1, 0
  %v1992 = vsel %vm1980, 1, 0
  %v1993 = vsel %vm1981, 1, 0
  %v1994 = vsel %vm1982, 1, 0
  %v1995 = vcvt.s32.f32 %v1983
  %v1996 = vcvt.s32.f32 %v1984
  %v1997 = vcvt.s32.f32 %v1985
  %v1998 = vcvt.s32.f32 %v1986
  %v1999 = vcvt.s32.f32 %v1987
  %v2000 = vcvt.s32.f32 %v1988
  %v2001 = vcvt.s32.f32 %v1989
  %v2002 = vcvt.s32.f32 %v1990
  %v2003 = vcvt.s32.f32 %v1991
  %v2004 = vcvt.s32.f32 %v1992
  %v2005 = vcvt.s32.f32 %v1993
  %v2006 = vcvt.s32.f32 %v1994
  %v2007 = vsub.f32 %v1839, %v1937
  %v2008 = vsub.f32 %v1840, %v1940
  %v2009 = vsub.f32 %v1841, %v1943
  %v2010 = vsub.f32 %v1842, %v1946
  %v2011 = vsub.f32 %v1843, %v1949
  %v2012 = vsub.f32 %v1844, %v1952
  %v2013 = vsub.f32 %v1845, %v1955
  %v2014 = vsub.f32 %v1846, %v1958
  %v2015 = vsub.f32 %v1847, %v1961
  %v2016 = vsub.f32 %v1848, %v1964
  %v2017 = vsub.f32 %v1849, %v1967
  %v2018 = vsub.f32 %v1850, %v1970
  %v2019 = vmul.f32 %v2007, %v1995
  %v2020 = vmul.f32 %v2008, %v1996
  %v2021 = vmul.f32 %v2009, %v1997
  %v2022 = vmul.f32 %v2010, %v1998
  %v2023 = vmul.f32 %v2011, %v1999
  %v2024 = vmul.f32 %v2012, %v2000
  %v2025 = vmul.f32 %v2013, %v2001
  %v2026 = vmul.f32 %v2014, %v2002
  %v2027 = vmul.f32 %v2015, %v2003
  %v2028 = vmul.f32 %v2016, %v2004
  %v2029 = vmul.f32 %v2017, %v2005
  %v2030 = vmul.f32 %v2018, %v2006
  %v2031 = vadd.s32 %v548, 16
  %v2032 = vadd.s32 %v548, 24
  %v2033 = vadd.s32 %v548, 32
  %v2034 = vadd.s32 %v548, 40
  %v2035 = vadd.s32 %v548, 48
  %v2036 = vadd.s32 %v548, 56
  %v2037 = vadd.s32 %v548, 64
  %v2038 = vadd.s32 %v548, 72
  %v2039 = vadd.s32 %v548, 80
  %v2040 = vadd.s32 %v548, 88
  %vm2041 = vcmp.lt.s32.totalorder %v548, 32
  %vm2042 = vcmp.lt.s32.totalorder %v549, 32
  %vm2043 = vcmp.lt.s32.totalorder %v2031, 32
  %vm2044 = vcmp.lt.s32.totalorder %v2032, 32
  %vm2045 = vcmp.lt.s32.totalorder %v2033, 32
  %vm2046 = vcmp.lt.s32.totalorder %v2034, 32
  %vm2047 = vcmp.lt.s32.totalorder %v2035, 32
  %vm2048 = vcmp.lt.s32.totalorder %v2036, 32
  %vm2049 = vcmp.lt.s32.totalorder %v2037, 32
  %vm2050 = vcmp.lt.s32.totalorder %v2038, 32
  %vm2051 = vcmp.lt.s32.totalorder %v2039, 32
  %vm2052 = vcmp.lt.s32.totalorder %v2040, 32
  %v2053 = vsel %vm2041, 1, 0
  %v2054 = vsel %vm2042, 1, 0
  %v2055 = vsel %vm2043, 1, 0
  %v2056 = vsel %vm2044, 1, 0
  %v2057 = vsel %vm2045, 1, 0
  %v2058 = vsel %vm2046, 1, 0
  %v2059 = vsel %vm2047, 1, 0
  %v2060 = vsel %vm2048, 1, 0
  %v2061 = vsel %vm2049, 1, 0
  %v2062 = vsel %vm2050, 1, 0
  %v2063 = vsel %vm2051, 1, 0
  %v2064 = vsel %vm2052, 1, 0
  %v2065 = vcvt.s32.f32 %v2053
  %v2066 = vcvt.s32.f32 %v2054
  %v2067 = vcvt.s32.f32 %v2055
  %v2068 = vcvt.s32.f32 %v2056
  %v2069 = vcvt.s32.f32 %v2057
  %v2070 = vcvt.s32.f32 %v2058
  %v2071 = vcvt.s32.f32 %v2059
  %v2072 = vcvt.s32.f32 %v2060
  %v2073 = vcvt.s32.f32 %v2061
  %v2074 = vcvt.s32.f32 %v2062
  %v2075 = vcvt.s32.f32 %v2063
  %v2076 = vcvt.s32.f32 %v2064
  %v2077 = vmul.f32 %v2019, %v2065
  %v2078 = vmul.f32 %v2020, %v2066
  %v2079 = vmul.f32 %v2021, %v2067
  %v2080 = vmul.f32 %v2022, %v2068
  %v2081 = vmul.f32 %v2023, %v2069
  %v2082 = vmul.f32 %v2024, %v2070
  %v2083 = vmul.f32 %v2025, %v2071
  %v2084 = vmul.f32 %v2026, %v2072
  %v2085 = vmul.f32 %v2027, %v2073
  %v2086 = vmul.f32 %v2028, %v2074
  %v2087 = vmul.f32 %v2029, %v2075
  %v2088 = vmul.f32 %v2030, %v2076
  %v2089 = vsel %vm998, %v2077, 0.0
  %v2090 = vsel %vm998, %v2078, 0.0
  %v2091 = vadd.f32 %v2089, %v2090
  %v2092 = vsel %vm998, %v2079, 0.0
  %v2093 = vadd.f32 %v2091, %v2092
  %v2094 = vsel %vm998, %v2080, 0.0
  %v2095 = vadd.f32 %v2093, %v2094
  %v2096 = vsel %vm998, %v2081, 0.0
  %v2097 = vadd.f32 %v2095, %v2096
  %v2098 = vsel %vm998, %v2082, 0.0
  %v2099 = vadd.f32 %v2097, %v2098
  %v2100 = vsel %vm998, %v2083, 0.0
  %v2101 = vadd.f32 %v2099, %v2100
  %v2102 = vsel %vm998, %v2084, 0.0
  %v2103 = vadd.f32 %v2101, %v2102
  %v2104 = vsel %vm998, %v2085, 0.0
  %v2105 = vadd.f32 %v2103, %v2104
  %v2106 = vsel %vm998, %v2086, 0.0
  %v2107 = vadd.f32 %v2105, %v2106
  %v2108 = vsel %vm998, %v2087, 0.0
  %v2109 = vadd.f32 %v2107, %v2108
  %v2110 = vsel %vm998, %v2088, 0.0
  %v2111 = vadd.f32 %v2109, %v2110
  %2112 = vadd.xlane.f32.xlu0 %v2111
  %v2113 = vpop.xlane.xlu0 %2112
  %v2114 = vrot.slane %v2113, 4
  %v2115 = vadd.f32 %v2113, %v2114
  %v2116 = vrot.slane %v2115, 2
  %v2117 = vadd.f32 %v2115, %v2116
  %v2118 = vrot.slane %v2117, 1
  %v2119 = vadd.f32 %v2117, %v2118
  %s2120 = vtos %v2119
  %v2121 = vmul.f32 %v1995, %v2065
  %v2122 = vmul.f32 %v1996, %v2066
  %v2123 = vmul.f32 %v1997, %v2067
  %v2124 = vmul.f32 %v1998, %v2068
  %v2125 = vmul.f32 %v1999, %v2069
  %v2126 = vmul.f32 %v2000, %v2070
  %v2127 = vmul.f32 %v2001, %v2071
  %v2128 = vmul.f32 %v2002, %v2072
  %v2129 = vmul.f32 %v2003, %v2073
  %v2130 = vmul.f32 %v2004, %v2074
  %v2131 = vmul.f32 %v2005, %v2075
  %v2132 = vmul.f32 %v2006, %v2076
  %v2133 = vsel %vm998, %v2121, 0.0
  %v2134 = vsel %vm998, %v2122, 0.0
  %v2135 = vadd.f32 %v2133, %v2134
  %v2136 = vsel %vm998, %v2123, 0.0
  %v2137 = vadd.f32 %v2135, %v2136
  %v2138 = vsel %vm998, %v2124, 0.0
  %v2139 = vadd.f32 %v2137, %v2138
  %v2140 = vsel %vm998, %v2125, 0.0
  %v2141 = vadd.f32 %v2139, %v2140
  %v2142 = vsel %vm998, %v2126, 0.0
  %v2143 = vadd.f32 %v2141, %v2142
  %v2144 = vsel %vm998, %v2127, 0.0
  %v2145 = vadd.f32 %v2143, %v2144
  %v2146 = vsel %vm998, %v2128, 0.0
  %v2147 = vadd.f32 %v2145, %v2146
  %v2148 = vsel %vm998, %v2129, 0.0
  %v2149 = vadd.f32 %v2147, %v2148
  %v2150 = vsel %vm998, %v2130, 0.0
  %v2151 = vadd.f32 %v2149, %v2150
  %v2152 = vsel %vm998, %v2131, 0.0
  %v2153 = vadd.f32 %v2151, %v2152
  %v2154 = vsel %vm998, %v2132, 0.0
  %v2155 = vadd.f32 %v2153, %v2154
  %2156 = vadd.xlane.f32.xlu0 %v2155
  %v2157 = vpop.xlane.xlu0 %2156
  %v2158 = vrot.slane %v2157, 4
  %v2159 = vadd.f32 %v2157, %v2158
  %v2160 = vrot.slane %v2159, 2
  %v2161 = vadd.f32 %v2159, %v2160
  %v2162 = vrot.slane %v2161, 1
  %v2163 = vadd.f32 %v2161, %v2162
  %s2164 = vtos %v2163
  %s2165 = smax.f32 %s2164, 1.0
  %v2166 = vstv %s2165
  %v2167 = vrcp.pop %v2166
  %s2168 = vtos %v2167
  %s2169 = smul.f32 %s2120, %s2168
  %v2170 = vsub.f32 1.0, %v2065
  %v2171 = vsub.f32 1.0, %v2066
  %v2172 = vsub.f32 1.0, %v2067
  %v2173 = vsub.f32 1.0, %v2068
  %v2174 = vsub.f32 1.0, %v2069
  %v2175 = vsub.f32 1.0, %v2070
  %v2176 = vsub.f32 1.0, %v2071
  %v2177 = vsub.f32 1.0, %v2072
  %v2178 = vsub.f32 1.0, %v2073
  %v2179 = vsub.f32 1.0, %v2074
  %v2180 = vsub.f32 1.0, %v2075
  %v2181 = vsub.f32 1.0, %v2076
  %v2182 = vmul.f32 %v2019, %v2170
  %v2183 = vmul.f32 %v2020, %v2171
  %v2184 = vmul.f32 %v2021, %v2172
  %v2185 = vmul.f32 %v2022, %v2173
  %v2186 = vmul.f32 %v2023, %v2174
  %v2187 = vmul.f32 %v2024, %v2175
  %v2188 = vmul.f32 %v2025, %v2176
  %v2189 = vmul.f32 %v2026, %v2177
  %v2190 = vmul.f32 %v2027, %v2178
  %v2191 = vmul.f32 %v2028, %v2179
  %v2192 = vmul.f32 %v2029, %v2180
  %v2193 = vmul.f32 %v2030, %v2181
  %v2194 = vsel %vm998, %v2182, 0.0
  %v2195 = vsel %vm998, %v2183, 0.0
  %v2196 = vadd.f32 %v2194, %v2195
  %v2197 = vsel %vm998, %v2184, 0.0
  %v2198 = vadd.f32 %v2196, %v2197
  %v2199 = vsel %vm998, %v2185, 0.0
  %v2200 = vadd.f32 %v2198, %v2199
  %v2201 = vsel %vm998, %v2186, 0.0
  %v2202 = vadd.f32 %v2200, %v2201
  %v2203 = vsel %vm998, %v2187, 0.0
  %v2204 = vadd.f32 %v2202, %v2203
  %v2205 = vsel %vm998, %v2188, 0.0
  %v2206 = vadd.f32 %v2204, %v2205
  %v2207 = vsel %vm998, %v2189, 0.0
  %v2208 = vadd.f32 %v2206, %v2207
  %v2209 = vsel %vm998, %v2190, 0.0
  %v2210 = vadd.f32 %v2208, %v2209
  %v2211 = vsel %vm998, %v2191, 0.0
  %v2212 = vadd.f32 %v2210, %v2211
  %v2213 = vsel %vm998, %v2192, 0.0
  %v2214 = vadd.f32 %v2212, %v2213
  %v2215 = vsel %vm998, %v2193, 0.0
  %v2216 = vadd.f32 %v2214, %v2215
  %2217 = vadd.xlane.f32.xlu0 %v2216
  %v2218 = vpop.xlane.xlu0 %2217
  %v2219 = vrot.slane %v2218, 4
  %v2220 = vadd.f32 %v2218, %v2219
  %v2221 = vrot.slane %v2220, 2
  %v2222 = vadd.f32 %v2220, %v2221
  %v2223 = vrot.slane %v2222, 1
  %v2224 = vadd.f32 %v2222, %v2223
  %s2225 = vtos %v2224
  %v2226 = vmul.f32 %v1995, %v2170
  %v2227 = vmul.f32 %v1996, %v2171
  %v2228 = vmul.f32 %v1997, %v2172
  %v2229 = vmul.f32 %v1998, %v2173
  %v2230 = vmul.f32 %v1999, %v2174
  %v2231 = vmul.f32 %v2000, %v2175
  %v2232 = vmul.f32 %v2001, %v2176
  %v2233 = vmul.f32 %v2002, %v2177
  %v2234 = vmul.f32 %v2003, %v2178
  %v2235 = vmul.f32 %v2004, %v2179
  %v2236 = vmul.f32 %v2005, %v2180
  %v2237 = vmul.f32 %v2006, %v2181
  %v2238 = vsel %vm998, %v2226, 0.0
  %v2239 = vsel %vm998, %v2227, 0.0
  %v2240 = vadd.f32 %v2238, %v2239
  %v2241 = vsel %vm998, %v2228, 0.0
  %v2242 = vadd.f32 %v2240, %v2241
  %v2243 = vsel %vm998, %v2229, 0.0
  %v2244 = vadd.f32 %v2242, %v2243
  %v2245 = vsel %vm998, %v2230, 0.0
  %v2246 = vadd.f32 %v2244, %v2245
  %v2247 = vsel %vm998, %v2231, 0.0
  %v2248 = vadd.f32 %v2246, %v2247
  %v2249 = vsel %vm998, %v2232, 0.0
  %v2250 = vadd.f32 %v2248, %v2249
  %v2251 = vsel %vm998, %v2233, 0.0
  %v2252 = vadd.f32 %v2250, %v2251
  %v2253 = vsel %vm998, %v2234, 0.0
  %v2254 = vadd.f32 %v2252, %v2253
  %v2255 = vsel %vm998, %v2235, 0.0
  %v2256 = vadd.f32 %v2254, %v2255
  %v2257 = vsel %vm998, %v2236, 0.0
  %v2258 = vadd.f32 %v2256, %v2257
  %v2259 = vsel %vm998, %v2237, 0.0
  %v2260 = vadd.f32 %v2258, %v2259
  %2261 = vadd.xlane.f32.xlu0 %v2260
  %v2262 = vpop.xlane.xlu0 %2261
  %v2263 = vrot.slane %v2262, 4
  %v2264 = vadd.f32 %v2262, %v2263
  %v2265 = vrot.slane %v2264, 2
  %v2266 = vadd.f32 %v2264, %v2265
  %v2267 = vrot.slane %v2266, 1
  %v2268 = vadd.f32 %v2266, %v2267
  %s2269 = vtos %v2268
  %s2270 = smax.f32 %s2269, 1.0
  %v2271 = vstv %s2270
  %v2272 = vrcp.pop %v2271
  %s2273 = vtos %v2272
  %s2274 = smul.f32 %s2225, %s2273
  %vm2275 = vcmp.eq.s32.totalorder %v70, 0
  %v2276 = vsel %vm2275, 1.0, 0.0
  %v2277 = vstv %s1014
  %v2278 = vmul.f32 %v2276, %v2277
  %vm2279 = vcmp.eq.s32.totalorder %v70, 1
  %v2280 = vsel %vm2279, 1.0, 0.0
  %v2281 = vstv %s2169
  %v2282 = vmul.f32 %v2280, %v2281
  %v2283 = vadd.f32 %v2278, %v2282
  %vm2284 = vcmp.eq.s32.totalorder %v70, 2
  %v2285 = vsel %vm2284, 1.0, 0.0
  %v2286 = vstv %s2274
  %v2287 = vmul.f32 %v2285, %v2286
  %v2288 = vadd.f32 %v2283, %v2287
  %vm2289 = vcmask 24576
  %2290 = vst.msk [vmem:[%s17] sm:$0x1] %vm2289, %v2288
  // Predicated region
  $region66: #{dense_lm_model_forward.1} parent=0 // pred_check
    _
  $region67: #{dense_lm_model_forward.1} parent=0 // pred_check_branch
    %2292 = sbr.rel (0) target = $region69
  $region68: #{dense_lm_model_forward.1} parent=0 // pred_region
    _
  $region69: #{dense_lm_model_forward.1} parent=0 // pred_fallthru
    _
  // Predicated region
  $region70: #{dense_lm_model_forward.1} parent=0 // pred_check
    _
  $region71: #{dense_lm_model_forward.1} parent=0 // pred_check_branch
    %2294 = sbr.rel (0) target = $region73
  $region72: #{dense_lm_model_forward.1} parent=0 // pred_region
    _
  $region73: #{dense_lm_model_forward.1} parent=0 // pred_fallthru
    _
  // Predicated region
  $region74: #{dense_lm_model_forward.1} parent=0 // pred_check
    _
  $region75: #{dense_lm_model_forward.1} parent=0 // pred_check_branch
    %2296 = sbr.rel (0) target = $region77
  $region76: #{dense_lm_model_forward.1} parent=0 // pred_region
    _
  $region77: #{dense_lm_model_forward.1} parent=0 // pred_fallthru
    _
  // Predicated region
  $region78: #{dense_lm_model_forward.1} parent=0 // pred_check
    _
  $region79: #{dense_lm_model_forward.1} parent=0 // pred_check_branch
    %2298 = sbr.rel (0) target = $region81
  $region80: #{dense_lm_model_forward.1} parent=0 // pred_region
    _
  $region81: #{dense_lm_model_forward.1} parent=0 // pred_fallthru
    _
  // Predicated region
  $region82: #{dense_lm_model_forward.1} parent=0 // pred_check
    _
  $region83: #{dense_lm_model_forward.1} parent=0 // pred_check_branch
    %2300 = sbr.rel (0) target = $region85
  $region84: #{dense_lm_model_forward.1} parent=0 // pred_region
    _
  $region85: #{dense_lm_model_forward.1} parent=0 // pred_fallthru
    _
  // Predicated region
  $region86: #{dense_lm_model_forward.1} parent=0 // pred_check
    _
  $region87: #{dense_lm_model_forward.1} parent=0 // pred_check_branch
    %2302 = sbr.rel (0) target = $region89
  $region88: #{dense_lm_model_forward.1} parent=0 // pred_region
    _
  $region89: #{dense_lm_model_forward.1} parent=0 // pred_fallthru
    _

</llo_original>
